<compile_context>
chip_gen: v5e
topology: v5e:2x2
jax: 0.10.0
libtpu: 0.0.40
codegen_flags: <defaults>
</compile_context>

<pallas_src>
import jax
import jax.numpy as jnp
from jax.experimental import pallas as pl
from jax.experimental.pallas import tpu as pltpu

NUM_LAYERS = 2  # hparams.num_layers
EMB_DIM = 32    # hparams.emb_dim


def holo_kernel(x_ref, w0_ref, wfused_ref, bfused_ref, wout_ref, bout_ref, o_ref):
    """One batch tile of the Highway + Linear head.

    x_ref      : (TILE_B, S*E)  lane-dense input tile (bf16 or f32), streamed.
    w0_ref     : (S*E, 3E)      layer-0 fused weight with the S-mean folded in.
    wfused_ref : (L, E, 3E)     fused [Wnl | Wlin | Wg] per layer (row 0 unused).
    bfused_ref : (L, 1, 3E)     fused biases.
    wout_ref   : (1, E), bout_ref : (1, 1)   final Linear(E, 1).
    o_ref      : (TILE_B, 1)
    """
    w_all = wfused_ref[...]          # tiny, VMEM-resident
    b_all = bfused_ref[...]
    e = wout_ref.shape[-1]

    # Layer 0: mean over S is pre-folded into w0 (tile(W0,(S,1))/S), so this is
    # a single (TILE_B, S*E) @ (S*E, 3E) MXU pass with f32 accumulation. The
    # f32 upcast of the tile exists only as the matmul operand -- no separate
    # cross-sublane reduce keeps it live afterwards.
    z = jnp.dot(x_ref[...].astype(jnp.float32), w0_ref[...],
                preferred_element_type=jnp.float32,
                precision=jax.lax.Precision.HIGHEST) + b_all[0]

    def highway(z):
        nl = jnp.maximum(z[:, :e], 0.0)        # relu branch (VPU)
        lin = z[:, e:2 * e]                    # linear branch
        g = jax.nn.sigmoid(z[:, 2 * e:])       # gate (EUP)
        return g * nl + (1.0 - g) * lin

    h = highway(z)
    for l in range(1, w_all.shape[0]):         # static unroll; (E, 3E) MXU passes
        z = jnp.dot(h, w_all[l], preferred_element_type=jnp.float32,
                    precision=jax.lax.Precision.HIGHEST) + b_all[l]
        h = highway(z)

    # Final E -> 1 projection as VPU multiply + lane reduce; an N=1 matmul would
    # burn a full MXU pass for a single useful lane.
    out = jnp.sum(h * wout_ref[...], axis=-1, keepdims=True) + bout_ref[...]
    o_ref[...] = out.astype(o_ref.dtype)


def _vmem_capacity_bytes():
    """Per-generation VMEM capacity (v5e/v6e: 128 MiB, v7x: 64 MiB per TC)."""
    try:
        return int(pltpu.get_tpu_info().vmem_capacity_bytes)
    except Exception:
        return 64 << 20  # conservative fallback = v7x per-TensorCore VMEM


def _pick_tile_b(b, row_bytes, vmem_cap):
    """Batch tile for the lane-dense (B, S*E) stream.

    * >= 512 rows amortizes the ~0.35us/grid-step overhead (mem-bound kernels
      need that to approach the ~85% HBM-roofline regime).
    * double-buffered input rows plus ~2 KiB/row of f32 in-kernel intermediates
      (matmul operand upcast, z/h activations) must fit a per-gen VMEM budget.
    * multiple of 16 so bf16 rows pack sublanes cleanly.
    * keep >= 2 grid steps when the batch allows it so ("parallel",) can shard
      the batch across both TensorCores on v7x.
    """
    if b <= 16:
        return b
    per_row = 2 * row_bytes + 2048               # 2x streamed buf + f32 temps
    budget = min(vmem_cap // 2, 48 << 20)        # v7x: stay inside 64 MiB/TC
    tile = min(budget // per_row, 4096)          # diminishing returns past ~1-2k
    tile = min(tile, pl.cdiv(b, 2))              # >= 2 grid steps (v7x megacore)
    tile = max(16, (tile // 16) * 16)
    return int(tile)


def holo_forward(x, params, tile_b=None):
    """x: (B, S, E) float array (bf16 recommended: the kernel is HBM-read bound
    on x, so halving the streamed bytes is ~2x wall-clock). Weights and all
    accumulation stay f32."""
    B, S, E = x.shape
    w_nl, b_nl, w_lin, b_lin, w_g, b_g, w_out, b_out = params
    num_layers = w_nl.shape[0]

    # Fuse the three highway branches into one [*, 3E] matmul per layer, and
    # fold the mean over S into the layer-0 weight:
    #   mean(x, 1) @ W0 == x.reshape(B, S*E) @ (tile(W0, (S, 1)) / S)
    # The (B, S*E) reshape is a free row-major metadata view, keeping the whole
    # kernel lane-dense end to end.
    w_fused = jnp.concatenate([w_nl, w_lin, w_g], axis=-1)         # (L, E, 3E)
    b_fused = jnp.concatenate([b_nl, b_lin, b_g], axis=-1)         # (L, 1, 3E)
    w0_big = jnp.tile(w_fused[0], (S, 1)) / jnp.float32(S)         # (S*E, 3E)
    w_out_row = w_out.reshape(1, E)                                # (1, E)
    x_flat = x.reshape(B, S * E)                                   # lane-dense view

    vmem_cap = _vmem_capacity_bytes()
    if tile_b is None:
        tile_b = _pick_tile_b(B, S * E * x.dtype.itemsize, vmem_cap)
    tile_b = min(tile_b, B)
    grid = (pl.cdiv(B, tile_b),)

    weight_bytes = 4 * (w0_big.size + w_fused.size + b_fused.size
                        + w_out_row.size + b_out.size)
    cost = pl.CostEstimate(
        flops=(2 * B * (S * E) * (3 * E)                        # folded layer 0
               + 2 * B * E * (3 * E) * max(num_layers - 1, 0)   # layers 1..L-1
               + 2 * B * E),                                    # final projection
        transcendentals=B * E * num_layers,                     # sigmoid gates
        bytes_accessed=x_flat.size * x.dtype.itemsize + weight_bytes + B * 4,
    )

    return pl.pallas_call(
        holo_kernel,
        out_shape=jax.ShapeDtypeStruct((B, 1), jnp.float32),
        grid=grid,
        in_specs=[
            # Streamed, lane-dense input: (tile_b, S*E) is exactly (8,128)-tiled
            # with contiguous rows; double-buffered by the pipeline.
            pl.BlockSpec((tile_b, S * E), lambda i: (i, 0)),
            # Tiny resident weights (<130 KiB total).
            pl.BlockSpec(w0_big.shape, lambda i: (0, 0)),
            pl.BlockSpec(w_fused.shape, lambda i: (0, 0, 0)),
            pl.BlockSpec(b_fused.shape, lambda i: (0, 0, 0)),
            pl.BlockSpec(w_out_row.shape, lambda i: (0, 0)),
            pl.BlockSpec(b_out.shape, lambda i: (0, 0)),
        ],
        # (B, 1) output is B*4 bytes total -- the narrow masked store is
        # negligible next to the input stream, so it stays narrow on purpose.
        out_specs=pl.BlockSpec((tile_b, 1), lambda i: (i, 0)),
        compiler_params=pltpu.CompilerParams(
            dimension_semantics=("parallel",),       # megacore-shard batch tiles
            vmem_limit_bytes=int(min(3 * vmem_cap // 4, 64 << 20)),
        ),
        cost_estimate=cost,
    )(x_flat, w0_big, w_fused, b_fused, w_out_row, b_out)


def init_params(key, emb_dim=EMB_DIM, num_layers=NUM_LAYERS):
    ks = jax.random.split(key, 7)
    scale = 1.0 / jnp.sqrt(emb_dim)
    # Highway: three Linear(E, E) stacks (nonlinear, linear, gate), stored [in, out].
    w_nl  = jax.random.uniform(ks[0], (num_layers, emb_dim, emb_dim), jnp.float32, -scale, scale)
    b_nl  = jax.random.uniform(ks[1], (num_layers, 1, emb_dim), jnp.float32, -scale, scale)
    w_lin = jax.random.uniform(ks[2], (num_layers, emb_dim, emb_dim), jnp.float32, -scale, scale)
    b_lin = jax.random.uniform(ks[3], (num_layers, 1, emb_dim), jnp.float32, -scale, scale)
    w_g   = jax.random.uniform(ks[4], (num_layers, emb_dim, emb_dim), jnp.float32, -scale, scale)
    b_g   = jax.random.uniform(ks[5], (num_layers, 1, emb_dim), jnp.float32, -scale, scale)
    # Final Linear(E, 1), stored [in, out].
    k_out1, k_out2 = jax.random.split(ks[6])
    w_out = jax.random.uniform(k_out1, (emb_dim, 1), jnp.float32, -scale, scale)
    b_out = jax.random.uniform(k_out2, (1, 1), jnp.float32, -scale, scale)
    return (w_nl, b_nl, w_lin, b_lin, w_g, b_g, w_out, b_out)


def holo_reference(x, params):
    """Pure-JAX reference (unfused weights, module semantics, exact f32 math).
    Consumes the same (possibly bf16) x as the kernel; only the streamed input
    is low precision, all arithmetic is f32."""
    w_nl, b_nl, w_lin, b_lin, w_g, b_g, w_out, b_out = params
    h = jnp.mean(x.astype(jnp.float32), axis=1)
    for l in range(w_nl.shape[0]):
        nl = jax.nn.relu(jnp.dot(h, w_nl[l], precision="highest") + b_nl[l])
        lin = jnp.dot(h, w_lin[l], precision="highest") + b_lin[l]
        g = jax.nn.sigmoid(jnp.dot(h, w_g[l], precision="highest") + b_g[l])
        h = g * nl + (1.0 - g) * lin
    return jnp.dot(h, w_out, precision="highest") + b_out


if __name__ == "__main__":
    key = jax.random.PRNGKey(0)
    k_x, k_p = jax.random.split(key)

    B, S, E = 64, 8, EMB_DIM
    # Stream the input in bf16 (the kernel is HBM-bound on x); kernel and
    # reference consume the same bf16 data, all math/accumulation is f32.
    x = jax.random.normal(k_x, (B, S, E), dtype=jnp.float32).astype(jnp.bfloat16)
    params = init_params(k_p)

    # tile_b=16 forces a 4-step batch grid so the pipelined/tiled path (and
    # megacore sharding on v7x) is exercised even at this small demo size.
    out = holo_forward(x, params, tile_b=16)
    out = jax.block_until_ready(out)

    ref = holo_reference(x, params)
    assert out.shape == (B, 1), out.shape
    err = jnp.max(jnp.abs(out - ref))
    assert jnp.allclose(out, ref, atol=1e-4, rtol=1e-4), f"max abs err = {err}"

    print("KERNEL_OK")
</pallas_src>

<mosaic_0001>
module attributes {stable_mosaic.version = 11 : i64} {
  func.func @holo_kernel(%arg0: i32, %arg1: memref<16x256xbf16, #tpu.memory_space<vmem>>, %arg2: memref<256x96xf32, #tpu.memory_space<vmem>>, %arg3: memref<2x32x96xf32, #tpu.memory_space<vmem>>, %arg4: memref<2x1x96xf32, #tpu.memory_space<vmem>>, %arg5: memref<1x32xf32, #tpu.memory_space<vmem>>, %arg6: memref<1x1xf32, #tpu.memory_space<vmem>>, %arg7: memref<16x1xf32, #tpu.memory_space<vmem>>) attributes {dimension_semantics = [#tpu.dimension_semantics<parallel>], iteration_bounds = array<i64: 4>, scalar_prefetch = 0 : i64, scratch_operands = 0 : i64, tpu.core_type = #tpu.core_type<tc>, window_params = [{transform_indices = @transform_0, window_bounds = array<i64: 16, 256>}, {pipeline_mode = #tpu.pipeline_mode<synchronous>, transform_indices = @transform_1, window_bounds = array<i64: 256, 96>}, {pipeline_mode = #tpu.pipeline_mode<synchronous>, transform_indices = @transform_2, window_bounds = array<i64: 2, 32, 96>}, {pipeline_mode = #tpu.pipeline_mode<synchronous>, transform_indices = @transform_3, window_bounds = array<i64: 2, 1, 96>}, {pipeline_mode = #tpu.pipeline_mode<synchronous>, transform_indices = @transform_4, window_bounds = array<i64: 1, 32>}, {pipeline_mode = #tpu.pipeline_mode<synchronous>, transform_indices = @transform_5, window_bounds = array<i64: 1, 1>}, {transform_indices = @transform_6, window_bounds = array<i64: 16, 1>}]} {
    %c0 = arith.constant 0 : index
    %c0_0 = arith.constant 0 : index
    %c0_1 = arith.constant 0 : index
    %0 = vector.load %arg3[%c0, %c0_0, %c0_1] : memref<2x32x96xf32, #tpu.memory_space<vmem>>, vector<2x32x96xf32>
    %c0_2 = arith.constant 0 : index
    %c0_3 = arith.constant 0 : index
    %c0_4 = arith.constant 0 : index
    %1 = vector.load %arg4[%c0_2, %c0_3, %c0_4] : memref<2x1x96xf32, #tpu.memory_space<vmem>>, vector<2x1x96xf32>
    %c0_5 = arith.constant 0 : index
    %c0_6 = arith.constant 0 : index
    %2 = vector.load %arg1[%c0_5, %c0_6] : memref<16x256xbf16, #tpu.memory_space<vmem>>, vector<16x256xbf16>
    %3 = arith.extf %2 : vector<16x256xbf16> to vector<16x256xf32>
    %c0_7 = arith.constant 0 : index
    %c0_8 = arith.constant 0 : index
    %4 = vector.load %arg2[%c0_7, %c0_8] : memref<256x96xf32, #tpu.memory_space<vmem>>, vector<256x96xf32>
    %cst = arith.constant dense<0.000000e+00> : vector<16x96xf32>
    %5 = tpu.matmul %3, %4, %cst {dimension_numbers = #tpu.dot_dimension_numbers<[1], [0], [0], [1], [0, 0, 1, 1], [], []>, precision = #tpu.contract_precision<fp32>} : vector<16x256xf32>, vector<256x96xf32>, vector<16x96xf32> -> vector<16x96xf32>
    %6 = vector.extract_strided_slice %1 {offsets = [0, 0, 0], sizes = [1, 1, 96], strides = [1, 1, 1]} : vector<2x1x96xf32> to vector<1x1x96xf32>
    %7 = vector.shape_cast %6 : vector<1x1x96xf32> to vector<1x96xf32>
    %8 = vector.broadcast %7 : vector<1x96xf32> to vector<16x96xf32>
    %9 = arith.addf %5, %8 : vector<16x96xf32>
    %10 = vector.extract_strided_slice %9 {offsets = [0, 0], sizes = [16, 32], strides = [1, 1]} : vector<16x96xf32> to vector<16x32xf32>
    %cst_9 = arith.constant 0.000000e+00 : f32
    %11 = vector.broadcast %cst_9 : f32 to vector<16x32xf32>
    %12 = arith.maximumf %10, %11 : vector<16x32xf32>
    %13 = vector.extract_strided_slice %9 {offsets = [0, 32], sizes = [16, 32], strides = [1, 1]} : vector<16x96xf32> to vector<16x32xf32>
    %14 = vector.extract_strided_slice %9 {offsets = [0, 64], sizes = [16, 32], strides = [1, 1]} : vector<16x96xf32> to vector<16x32xf32>
    %15 = arith.negf %14 : vector<16x32xf32>
    %16 = math.exp %15 : vector<16x32xf32>
    %cst_10 = arith.constant 1.000000e+00 : f32
    %17 = vector.broadcast %cst_10 : f32 to vector<16x32xf32>
    %18 = arith.addf %17, %16 : vector<16x32xf32>
    %19 = arith.divf %17, %18 : vector<16x32xf32>
    %20 = arith.mulf %19, %12 : vector<16x32xf32>
    %cst_11 = arith.constant 1.000000e+00 : f32
    %21 = vector.broadcast %cst_11 : f32 to vector<16x32xf32>
    %22 = arith.subf %21, %19 : vector<16x32xf32>
    %23 = arith.mulf %22, %13 : vector<16x32xf32>
    %24 = arith.addf %20, %23 : vector<16x32xf32>
    %25 = vector.extract_strided_slice %0 {offsets = [1, 0, 0], sizes = [1, 32, 96], strides = [1, 1, 1]} : vector<2x32x96xf32> to vector<1x32x96xf32>
    %26 = vector.shape_cast %25 : vector<1x32x96xf32> to vector<32x96xf32>
    %cst_12 = arith.constant dense<0.000000e+00> : vector<16x96xf32>
    %27 = tpu.matmul %24, %26, %cst_12 {dimension_numbers = #tpu.dot_dimension_numbers<[1], [0], [0], [1], [0, 0, 1, 1], [], []>, precision = #tpu.contract_precision<fp32>} : vector<16x32xf32>, vector<32x96xf32>, vector<16x96xf32> -> vector<16x96xf32>
    %28 = vector.extract_strided_slice %1 {offsets = [1, 0, 0], sizes = [1, 1, 96], strides = [1, 1, 1]} : vector<2x1x96xf32> to vector<1x1x96xf32>
    %29 = vector.shape_cast %28 : vector<1x1x96xf32> to vector<1x96xf32>
    %30 = vector.broadcast %29 : vector<1x96xf32> to vector<16x96xf32>
    %31 = arith.addf %27, %30 : vector<16x96xf32>
    %32 = vector.extract_strided_slice %31 {offsets = [0, 0], sizes = [16, 32], strides = [1, 1]} : vector<16x96xf32> to vector<16x32xf32>
    %cst_13 = arith.constant 0.000000e+00 : f32
    %33 = vector.broadcast %cst_13 : f32 to vector<16x32xf32>
    %34 = arith.maximumf %32, %33 : vector<16x32xf32>
    %35 = vector.extract_strided_slice %31 {offsets = [0, 32], sizes = [16, 32], strides = [1, 1]} : vector<16x96xf32> to vector<16x32xf32>
    %36 = vector.extract_strided_slice %31 {offsets = [0, 64], sizes = [16, 32], strides = [1, 1]} : vector<16x96xf32> to vector<16x32xf32>
    %37 = arith.negf %36 : vector<16x32xf32>
    %38 = math.exp %37 : vector<16x32xf32>
    %cst_14 = arith.constant 1.000000e+00 : f32
    %39 = vector.broadcast %cst_14 : f32 to vector<16x32xf32>
    %40 = arith.addf %39, %38 : vector<16x32xf32>
    %41 = arith.divf %39, %40 : vector<16x32xf32>
    %42 = arith.mulf %41, %34 : vector<16x32xf32>
    %cst_15 = arith.constant 1.000000e+00 : f32
    %43 = vector.broadcast %cst_15 : f32 to vector<16x32xf32>
    %44 = arith.subf %43, %41 : vector<16x32xf32>
    %45 = arith.mulf %44, %35 : vector<16x32xf32>
    %46 = arith.addf %42, %45 : vector<16x32xf32>
    %c0_16 = arith.constant 0 : index
    %c0_17 = arith.constant 0 : index
    %47 = vector.load %arg5[%c0_16, %c0_17] : memref<1x32xf32, #tpu.memory_space<vmem>>, vector<1x32xf32>
    %48 = vector.broadcast %47 : vector<1x32xf32> to vector<16x32xf32>
    %49 = arith.mulf %46, %48 : vector<16x32xf32>
    %cst_18 = arith.constant dense<0.000000e+00> : vector<16xf32>
    %50 = vector.multi_reduction <add>, %49, %cst_18 [1] : vector<16x32xf32> to vector<16xf32>
    %51 = vector.shape_cast %50 : vector<16xf32> to vector<16x1xf32>
    %c0_19 = arith.constant 0 : index
    %c0_20 = arith.constant 0 : index
    %52 = vector.load %arg6[%c0_19, %c0_20] : memref<1x1xf32, #tpu.memory_space<vmem>>, vector<1x1xf32>
    %53 = vector.broadcast %52 : vector<1x1xf32> to vector<16x1xf32>
    %54 = arith.addf %51, %53 : vector<16x1xf32>
    %c0_21 = arith.constant 0 : index
    %c0_22 = arith.constant 0 : index
    %55 = vector.load %arg7[%c0_21, %c0_22] : memref<16x1xf32, #tpu.memory_space<vmem>>, vector<16x1xf32>
    tpu.vector_store %arg7[%c0_21, %c0_22], %54 {strides = array<i32>} : memref<16x1xf32, #tpu.memory_space<vmem>>, vector<16x1xf32>,
    return
  }
  func.func @transform_0(%arg0: i32) -> (i32, i32) {
    %c0_i32 = arith.constant 0 : i32
    %c0_i32_0 = arith.constant 0 : i32
    return %arg0, %c0_i32 : i32, i32
  }
  func.func @transform_1(%arg0: i32) -> (i32, i32) {
    %c0_i32 = arith.constant 0 : i32
    %c0_i32_0 = arith.constant 0 : i32
    %c0_i32_1 = arith.constant 0 : i32
    return %c0_i32, %c0_i32_0 : i32, i32
  }
  func.func @transform_2(%arg0: i32) -> (i32, i32, i32) {
    %c0_i32 = arith.constant 0 : i32
    %c0_i32_0 = arith.constant 0 : i32
    %c0_i32_1 = arith.constant 0 : i32
    %c0_i32_2 = arith.constant 0 : i32
    return %c0_i32, %c0_i32_0, %c0_i32_1 : i32, i32, i32
  }
  func.func @transform_3(%arg0: i32) -> (i32, i32, i32) {
    %c0_i32 = arith.constant 0 : i32
    %c0_i32_0 = arith.constant 0 : i32
    %c0_i32_1 = arith.constant 0 : i32
    %c0_i32_2 = arith.constant 0 : i32
    return %c0_i32, %c0_i32_0, %c0_i32_1 : i32, i32, i32
  }
  func.func @transform_4(%arg0: i32) -> (i32, i32) {
    %c0_i32 = arith.constant 0 : i32
    %c0_i32_0 = arith.constant 0 : i32
    %c0_i32_1 = arith.constant 0 : i32
    return %c0_i32, %c0_i32_0 : i32, i32
  }
  func.func @transform_5(%arg0: i32) -> (i32, i32) {
    %c0_i32 = arith.constant 0 : i32
    %c0_i32_0 = arith.constant 0 : i32
    %c0_i32_1 = arith.constant 0 : i32
    return %c0_i32, %c0_i32_0 : i32, i32
  }
  func.func @transform_6(%arg0: i32) -> (i32, i32) {
    %c0_i32 = arith.constant 0 : i32
    %c0_i32_0 = arith.constant 0 : i32
    return %arg0, %c0_i32 : i32, i32
  }
}

</mosaic_0001>

<llo_original>
// kernel: tpu_custom_call.1
$region0: #{tpu_custom_call.1}
  #allocation0 [shape = 'u32[]', space=smem, size = 0x4, offset = 0x4, fixed_abs, tag = 'smem constant byte address 0x4 - core index']
  #allocation1 [shape = 'u32[72,128]{1,0:T(1,128)}', space=vmem, size = 0x9000, scoped, tag = 'internal scratch']
  #allocation2 [shape = 'f32[1,1]{1,0:T(1,128)S(1)}', space=vmem, size = 0x200, scoped, tag = 'scoped memory for tpu_custom_call.1']
  %s0 = inlined_call_operand.vmem [shape: bf16[64,256], index: 0, kind: input, shape index: {}]
  %s1 = inlined_call_operand.vmem [shape: f32[256,96], index: 1, kind: input, shape index: {}]
  %s2 = inlined_call_operand.vmem [shape: f32[2,32,96], index: 2, kind: input, shape index: {}]
  %s3 = inlined_call_operand.vmem [shape: f32[2,1,96], index: 3, kind: input, shape index: {}]
  %s4 = inlined_call_operand.vmem [shape: f32[1,32], index: 4, kind: input, shape index: {}]
  %s5 = inlined_call_operand.<no memory space> [shape: f32[1,1], index: 5, kind: input, shape index: {}]
  %s6 = inlined_call_operand.vmem [shape: f32[64,1], index: 6, kind: output, shape index: {}]
  %s7 = sld [smem:[#allocation0]]
  $region57: #{tpu_custom_call.1} parent=0
    _
  %s9 = ssub.s32 1, %s7
  %s10 = scalar_select 0, %s9, %s7
  %v11 = vstv %s5
  %12 = vst [vmem:[#allocation2] sm:$0x1] %v11
  loop: start=0, step=1, limit=6
  $region2: #{tpu_custom_call.1} parent=0 // loop_pre_header
    _
  $region3: #{tpu_custom_call.1} parent=0 // loop_header
    %s14 = sphi 0, %s18
    %p15 = scmp.ge.s32.totalorder %s14, 6
    %s24 = sphi 0, %s26
    %s27 = sphi 0, %s24
    %s28 = sphi 0, %s27
    %s44 = sphi 0, %s28
    %s48 = sphi 0, %s48
    %s50 = sphi 0, %s48
    %s51 = sphi 0, %s50
    %s65 = sphi 0, %s51
    %s69 = sphi 0, %s69
    %s71 = sphi 0, %s69
    %s72 = sphi 0, %s71
    %s86 = sphi 0, %s72
    %s90 = sphi 0, %s90
    %s92 = sphi 0, %s90
    %s93 = sphi 0, %s92
    %s107 = sphi 0, %s93
    %s111 = sphi 0, %s111
    %s113 = sphi 0, %s111
    %s114 = sphi 0, %s113
    %s128 = sphi 0, %s114
    %s132 = sphi 0, %s132
    %s134 = sphi 0, %s132
    %s135 = sphi 0, %s134
    %s149 = sphi 0, %s135
    %s155 = sphi 0, %s157
    %s158 = sphi 0, %s155
    %s159 = sphi 0, %s158
    %s175 = sphi 0, %s159
  $region4: #{tpu_custom_call.1} parent=0 // loop_header_branch
    %17 = sbr.rel (%p15) target = $region8
  $region5: #{tpu_custom_call.1} parent=0 // loop_body
    %s19 = ssub.s32 %s14, 1
    %s20 = ssub.s32 %s14, 2
    %s21 = sadd.s32 %s14, 1
    %s22 = ssub.s32 %s14, %s21
    %p23 = scmp.eq.s32.totalorder %s22, 0
    %s25 = sadd.s32 %s24, 1
    %s26 = scalar_select %p23, %s24, %s25
    %p29 = pneg %p23
    %p30 = scmp.eq.s32.totalorder %s14, 3
    %p31 = por %p29, %p30
    %p32 = scmp.ne.s32.totalorder %s24, %s27
    %p33 = scmp.eq.s32.totalorder %s14, 0
    %p34 = por %p32, %p33
    %p35 = scmp.ne.s32.totalorder %s24, %s27
    %p36 = scmp.eq.s32.totalorder %s19, 3
    %p37 = por %p35, %p36
    %p38 = scmp.ne.s32.totalorder %s27, %s28
    %p39 = scmp.eq.s32.totalorder %s19, 0
    %p40 = por %p38, %p39
    %p41 = scmp.ne.s32.totalorder %s27, %s28
    %p42 = scmp.eq.s32.totalorder %s20, 3
    %p43 = por %p41, %p42
    %p45 = scmp.ne.s32.totalorder %s28, %s44
    %p46 = scmp.eq.s32.totalorder %s20, 0
    %p47 = por %p45, %p46
    %s49 = sadd.s32 %s48, 1
    %p52 = scmp.eq.s32.totalorder %s14, 3
    %p53 = scmp.ne.s32.totalorder %s48, %s50
    %p54 = scmp.eq.s32.totalorder %s14, 0
    %p55 = por %p53, %p54
    %p56 = scmp.ne.s32.totalorder %s48, %s50
    %p57 = scmp.eq.s32.totalorder %s19, 3
    %p58 = por %p56, %p57
    %p59 = scmp.ne.s32.totalorder %s50, %s51
    %p60 = scmp.eq.s32.totalorder %s19, 0
    %p61 = por %p59, %p60
    %p62 = scmp.ne.s32.totalorder %s50, %s51
    %p63 = scmp.eq.s32.totalorder %s20, 3
    %p64 = por %p62, %p63
    %p66 = scmp.ne.s32.totalorder %s51, %s65
    %p67 = scmp.eq.s32.totalorder %s20, 0
    %p68 = por %p66, %p67
    %s70 = sadd.s32 %s69, 1
    %p73 = scmp.eq.s32.totalorder %s14, 3
    %p74 = scmp.ne.s32.totalorder %s69, %s71
    %p75 = scmp.eq.s32.totalorder %s14, 0
    %p76 = por %p74, %p75
    %p77 = scmp.ne.s32.totalorder %s69, %s71
    %p78 = scmp.eq.s32.totalorder %s19, 3
    %p79 = por %p77, %p78
    %p80 = scmp.ne.s32.totalorder %s71, %s72
    %p81 = scmp.eq.s32.totalorder %s19, 0
    %p82 = por %p80, %p81
    %p83 = scmp.ne.s32.totalorder %s71, %s72
    %p84 = scmp.eq.s32.totalorder %s20, 3
    %p85 = por %p83, %p84
    %p87 = scmp.ne.s32.totalorder %s72, %s86
    %p88 = scmp.eq.s32.totalorder %s20, 0
    %p89 = por %p87, %p88
    %s91 = sadd.s32 %s90, 1
    %p94 = scmp.eq.s32.totalorder %s14, 3
    %p95 = scmp.ne.s32.totalorder %s90, %s92
    %p96 = scmp.eq.s32.totalorder %s14, 0
    %p97 = por %p95, %p96
    %p98 = scmp.ne.s32.totalorder %s90, %s92
    %p99 = scmp.eq.s32.totalorder %s19, 3
    %p100 = por %p98, %p99
    %p101 = scmp.ne.s32.totalorder %s92, %s93
    %p102 = scmp.eq.s32.totalorder %s19, 0
    %p103 = por %p101, %p102
    %p104 = scmp.ne.s32.totalorder %s92, %s93
    %p105 = scmp.eq.s32.totalorder %s20, 3
    %p106 = por %p104, %p105
    %p108 = scmp.ne.s32.totalorder %s93, %s107
    %p109 = scmp.eq.s32.totalorder %s20, 0
    %p110 = por %p108, %p109
    %s112 = sadd.s32 %s111, 1
    %p115 = scmp.eq.s32.totalorder %s14, 3
    %p116 = scmp.ne.s32.totalorder %s111, %s113
    %p117 = scmp.eq.s32.totalorder %s14, 0
    %p118 = por %p116, %p117
    %p119 = scmp.ne.s32.totalorder %s111, %s113
    %p120 = scmp.eq.s32.totalorder %s19, 3
    %p121 = por %p119, %p120
    %p122 = scmp.ne.s32.totalorder %s113, %s114
    %p123 = scmp.eq.s32.totalorder %s19, 0
    %p124 = por %p122, %p123
    %p125 = scmp.ne.s32.totalorder %s113, %s114
    %p126 = scmp.eq.s32.totalorder %s20, 3
    %p127 = por %p125, %p126
    %p129 = scmp.ne.s32.totalorder %s114, %s128
    %p130 = scmp.eq.s32.totalorder %s20, 0
    %p131 = por %p129, %p130
    %s133 = sadd.s32 %s132, 1
    %p136 = scmp.eq.s32.totalorder %s14, 3
    %p137 = scmp.ne.s32.totalorder %s132, %s134
    %p138 = scmp.eq.s32.totalorder %s14, 0
    %p139 = por %p137, %p138
    %p140 = scmp.ne.s32.totalorder %s132, %s134
    %p141 = scmp.eq.s32.totalorder %s19, 3
    %p142 = por %p140, %p141
    %p143 = scmp.ne.s32.totalorder %s134, %s135
    %p144 = scmp.eq.s32.totalorder %s19, 0
    %p145 = por %p143, %p144
    %p146 = scmp.ne.s32.totalorder %s134, %s135
    %p147 = scmp.eq.s32.totalorder %s20, 3
    %p148 = por %p146, %p147
    %p150 = scmp.ne.s32.totalorder %s135, %s149
    %p151 = scmp.eq.s32.totalorder %s20, 0
    %p152 = por %p150, %p151
    %s153 = ssub.s32 %s14, %s21
    %p154 = scmp.eq.s32.totalorder %s153, 0
    %s156 = sadd.s32 %s155, 1
    %s157 = scalar_select %p154, %s155, %s156
    %p160 = pneg %p154
    %p161 = scmp.eq.s32.totalorder %s14, 3
    %p162 = por %p160, %p161
    %p163 = scmp.ne.s32.totalorder %s155, %s158
    %p164 = scmp.eq.s32.totalorder %s14, 0
    %p165 = por %p163, %p164
    %p166 = scmp.ne.s32.totalorder %s155, %s158
    %p167 = scmp.eq.s32.totalorder %s19, 3
    %p168 = por %p166, %p167
    %p169 = scmp.ne.s32.totalorder %s158, %s159
    %p170 = scmp.eq.s32.totalorder %s19, 0
    %p171 = por %p169, %p170
    %p172 = scmp.ne.s32.totalorder %s158, %s159
    %p173 = scmp.eq.s32.totalorder %s20, 3
    %p174 = por %p172, %p173
    %p176 = scmp.ne.s32.totalorder %s159, %s175
    %p177 = scmp.eq.s32.totalorder %s20, 0
    %p178 = por %p176, %p177
    %p179 = scmp.le.s32.totalorder 1, %s14
    %p180 = scmp.lt.s32.totalorder %s14, 5
    %p181 = pnand %p179, %p180
    %p182 = pneg %p181
    // Predicated region
    $region9: #{tpu_custom_call.1} parent=5 // pred_check
      _
    $region10: #{tpu_custom_call.1} parent=5 // pred_check_branch
      %184 = sbr.rel (%p181) target = $region12
    $region11: #{tpu_custom_call.1} parent=5 // pred_region
      %s185 = ssub.s32 %s14, 1
      // Predicated region
      $region13: #{tpu_custom_call.1} parent=11 // pred_check
        %p186 = pneg %p61
      $region14: #{tpu_custom_call.1} parent=11 // pred_check_branch
        %188 = sbr.rel (%p186) target = $region16
      $region15: #{tpu_custom_call.1} parent=11 // pred_region
        _
      $region16: #{tpu_custom_call.1} parent=11 // pred_fallthru
        _
      // Predicated region
      $region17: #{tpu_custom_call.1} parent=11 // pred_check
        %p189 = pneg %p82
      $region18: #{tpu_custom_call.1} parent=11 // pred_check_branch
        %191 = sbr.rel (%p189) target = $region20
      $region19: #{tpu_custom_call.1} parent=11 // pred_region
        _
      $region20: #{tpu_custom_call.1} parent=11 // pred_fallthru
        _
      // Predicated region
      $region21: #{tpu_custom_call.1} parent=11 // pred_check
        %p192 = pneg %p103
      $region22: #{tpu_custom_call.1} parent=11 // pred_check_branch
        %194 = sbr.rel (%p192) target = $region24
      $region23: #{tpu_custom_call.1} parent=11 // pred_region
        _
      $region24: #{tpu_custom_call.1} parent=11 // pred_fallthru
        _
      // Predicated region
      $region25: #{tpu_custom_call.1} parent=11 // pred_check
        %p195 = pneg %p124
      $region26: #{tpu_custom_call.1} parent=11 // pred_check_branch
        %197 = sbr.rel (%p195) target = $region28
      $region27: #{tpu_custom_call.1} parent=11 // pred_region
        _
      $region28: #{tpu_custom_call.1} parent=11 // pred_fallthru
        _
      // Predicated region
      $region29: #{tpu_custom_call.1} parent=11 // pred_check
        %p198 = pneg %p145
      $region30: #{tpu_custom_call.1} parent=11 // pred_check_branch
        %200 = sbr.rel (%p198) target = $region32
      $region31: #{tpu_custom_call.1} parent=11 // pred_region
        _
      $region32: #{tpu_custom_call.1} parent=11 // pred_fallthru
        _
    $region12: #{tpu_custom_call.1} parent=5 // pred_fallthru
      _
    %p201 = scmp.lt.s32.totalorder %s14, 4
    // Predicated region
    $region33: #{tpu_custom_call.1} parent=5 // pred_check
      %p202 = pneg %p201
    $region34: #{tpu_custom_call.1} parent=5 // pred_check_branch
      %204 = sbr.rel (%p202) target = $region36
    $region35: #{tpu_custom_call.1} parent=5 // pred_region
      // Predicated region
      $region37: #{tpu_custom_call.1} parent=35 // pred_check
        %p205 = pneg %p34
      $region38: #{tpu_custom_call.1} parent=35 // pred_check_branch
        %207 = sbr.rel (%p205) target = $region40
      $region39: #{tpu_custom_call.1} parent=35 // pred_region
        %s208 = smul.u32 2, %s14
        %p209 = scmp.lt.s32.totalorder %s208, 7
        %s210 = scalar_select %p209, %s208, 7
        %s211 = smul.addr %s210, 2
        %s212 = smul.addr %s211, 4
        %s213 = scalar_lea.vmem %s0, %s212
        %s214 = smul.u32 2, %s14
      $region40: #{tpu_custom_call.1} parent=35 // pred_fallthru
        _
    $region36: #{tpu_custom_call.1} parent=5 // pred_fallthru
      _
    %p215 = scmp.le.s32.totalorder 1, %s14
    %p216 = scmp.lt.s32.totalorder %s14, 5
    %p217 = pnand %p215, %p216
    %p218 = pneg %p217
    // Predicated region
    $region41: #{tpu_custom_call.1} parent=5 // pred_check
      _
    $region42: #{tpu_custom_call.1} parent=5 // pred_check_branch
      %220 = sbr.rel (%p217) target = $region44
    $region43: #{tpu_custom_call.1} parent=5 // pred_region
      %s221 = ssub.s32 %s14, 1
      %s222 = smul.u32 2, %s19
      %p223 = scmp.lt.s32.totalorder %s222, 7
      %s224 = scalar_select %p223, %s222, 7
      %s225 = smul.addr %s224, 2
      %s226 = smul.addr %s225, 4
      %s227 = scalar_lea.vmem %s0, %s226
      %p228 = pneg %p40
      %p229 = pneg %p37
      %p230 = pneg %p61
      %p231 = pneg %p58
      %p232 = pneg %p82
      %p233 = pneg %p79
      %p234 = pneg %p103
      %p235 = pneg %p100
      %p236 = pneg %p124
      %p237 = pneg %p121
      %p238 = pneg %p145
      %p239 = pneg %p142
      %p240 = pneg %p171
      %p241 = pneg %p168
      %s242 = smul.u32 2, %s19
      %p243 = scmp.lt.s32.totalorder %s242, 7
      %s244 = scalar_select %p243, %s242, 7
      %s245 = smul.addr %s244, 8
      %s246 = scalar_lea.vmem %s6, %s245
      %s247 = smul.u32 2, %s19
      %p248 = scmp.lt.s32.totalorder %s247, 7
      %s249 = scalar_select %p248, %s247, 7
      %s250 = smul.addr %s249, 2
      %s251 = smul.addr %s250, 4
      %s252 = scalar_lea.vmem %s0, %s251
      %s253 = smul.u32 2, %s19
      %s254 = smul.u32 2, %s19
      %p255 = scmp.lt.s32.totalorder %s254, 7
      %s256 = scalar_select %p255, %s254, 7
      %s257 = smul.addr %s256, 8
      %s258 = scalar_lea.vmem %s6, %s257
      %s259 = smul.u32 2, %s19
      %v260 = vld [vmem:[%s2 + $0x20] sm:$0xff]
      %v261 = vld [vmem:[%s2 + $0x28] sm:$0xff]
      %v262 = vld [vmem:[%s2 + $0x30] sm:$0xff]
      %v263 = vld [vmem:[%s2 + $0x38] sm:$0xff]
      %v264 = vld [vmem:[%s3] sm:$0x1]
      %v265 = vld [vmem:[%s3 + $0x1] sm:$0x1]
      %v266 = vld [vmem:[%s252] sm:$0xff]
      %v267 = vld [vmem:[%s252 + $0x8] sm:$0xff]
      %v268 = vunpack.c.l.bf16 %v266
      %v269 = vunpack.c.h.bf16 %v266
      %v270 = vunpack.c.l.bf16 %v267
      %v271 = vunpack.c.h.bf16 %v267
      %v272 = vld [vmem:[%s1] sm:$0xff]
      %v273 = vld [vmem:[%s1 + $0x8] sm:$0xff]
      %v274 = vld [vmem:[%s1 + $0x10] sm:$0xff]
      %v275 = vld [vmem:[%s1 + $0x18] sm:$0xff]
      %v276 = vld [vmem:[%s1 + $0x20] sm:$0xff]
      %v277 = vld [vmem:[%s1 + $0x28] sm:$0xff]
      %v278 = vld [vmem:[%s1 + $0x30] sm:$0xff]
      %v279 = vld [vmem:[%s1 + $0x38] sm:$0xff]
      %v280 = vld [vmem:[%s1 + $0x40] sm:$0xff]
      %v281 = vld [vmem:[%s1 + $0x48] sm:$0xff]
      %v282 = vld [vmem:[%s1 + $0x50] sm:$0xff]
      %v283 = vld [vmem:[%s1 + $0x58] sm:$0xff]
      %v284 = vld [vmem:[%s1 + $0x60] sm:$0xff]
      %v285 = vld [vmem:[%s1 + $0x68] sm:$0xff]
      %v286 = vld [vmem:[%s1 + $0x70] sm:$0xff]
      %v287 = vld [vmem:[%s1 + $0x78] sm:$0xff]
      %v288 = vld [vmem:[%s1 + $0x80] sm:$0xff]
      %v289 = vld [vmem:[%s1 + $0x88] sm:$0xff]
      %v290 = vld [vmem:[%s1 + $0x90] sm:$0xff]
      %v291 = vld [vmem:[%s1 + $0x98] sm:$0xff]
      %v292 = vld [vmem:[%s1 + $0xa0] sm:$0xff]
      %v293 = vld [vmem:[%s1 + $0xa8] sm:$0xff]
      %v294 = vld [vmem:[%s1 + $0xb0] sm:$0xff]
      %v295 = vld [vmem:[%s1 + $0xb8] sm:$0xff]
      %v296 = vld [vmem:[%s1 + $0xc0] sm:$0xff]
      %v297 = vld [vmem:[%s1 + $0xc8] sm:$0xff]
      %v298 = vld [vmem:[%s1 + $0xd0] sm:$0xff]
      %v299 = vld [vmem:[%s1 + $0xd8] sm:$0xff]
      %v300 = vld [vmem:[%s1 + $0xe0] sm:$0xff]
      %v301 = vld [vmem:[%s1 + $0xe8] sm:$0xff]
      %v302 = vld [vmem:[%s1 + $0xf0] sm:$0xff]
      %v303 = vld [vmem:[%s1 + $0xf8] sm:$0xff]
      %v305 = vperm.slane %v264, 0
      %v307 = vand.u32 %v287, 4294901760
      %308 = vmatpush.msra.mxu0 %v307
      %v309 = vand.u32 %v286, 4294901760
      %310 = vmatpush.msra.mxu0 %v309
      %v311 = vand.u32 %v285, 4294901760
      %312 = vmatpush.msra.mxu0 %v311
      %v313 = vand.u32 %v284, 4294901760
      %314 = vmatpush.msra.mxu0 %v313
      %v315 = vand.u32 %v283, 4294901760
      %316 = vmatpush.msra.mxu0 %v315
      %v317 = vand.u32 %v282, 4294901760
      %318 = vmatpush.msra.mxu0 %v317
      %v319 = vand.u32 %v281, 4294901760
      %320 = vmatpush.msra.mxu0 %v319
      %v321 = vand.u32 %v280, 4294901760
      %322 = vmatpush.msra.mxu0 %v321
      %v323 = vand.u32 %v279, 4294901760
      %324 = vmatpush.msra.mxu0 %v323
      %v325 = vand.u32 %v278, 4294901760
      %326 = vmatpush.msra.mxu0 %v325
      %v327 = vand.u32 %v277, 4294901760
      %328 = vmatpush.msra.mxu0 %v327
      %v329 = vand.u32 %v276, 4294901760
      %330 = vmatpush.msra.mxu0 %v329
      %v331 = vand.u32 %v275, 4294901760
      %332 = vmatpush.msra.mxu0 %v331
      %v333 = vand.u32 %v274, 4294901760
      %334 = vmatpush.msra.mxu0 %v333
      %v335 = vand.u32 %v273, 4294901760
      %336 = vmatpush.msra.mxu0 %v335
      %v337 = vand.u32 %v272, 4294901760
      %338 = vmatpush.msra.mxu0 %v337
      %v339 = vsub.f32 %v268, %v268
      %v340 = vand.u32 %v339, 4294901760
      %v341 = vsub.f32 %v339, %v340
      %v342 = vand.u32 %v341, 4294901760
      %343 = vmatmul.f32.gmra.mxu0 %v342
      %v344 = vpop.f32.mrf.mxu0
      %v345 = vadd.f32 %v305, %v344
      %v346 = vsub.f32 %v270, %v270
      %v347 = vand.u32 %v346, 4294901760
      %v348 = vsub.f32 %v346, %v347
      %v349 = vand.u32 %v348, 4294901760
      %350 = vmatmul.f32.gmra.mxu0 %v349
      %v351 = vpop.f32.mrf.mxu0
      %v352 = vadd.f32 %v305, %v351
      %353 = vdwg.mxu0
      %v354 = vand.u32 %v287, 4294901760
      %v355 = vsub.f32 %v287, %v354
      %v356 = vand.u32 %v355, 4294901760
      %v357 = vsub.f32 %v355, %v356
      %v358 = vand.u32 %v357, 4294901760
      %359 = vmatpush.msra.mxu0 %v358
      %v360 = vand.u32 %v286, 4294901760
      %v361 = vsub.f32 %v286, %v360
      %v362 = vand.u32 %v361, 4294901760
      %v363 = vsub.f32 %v361, %v362
      %v364 = vand.u32 %v363, 4294901760
      %365 = vmatpush.msra.mxu0 %v364
      %v366 = vand.u32 %v285, 4294901760
      %v367 = vsub.f32 %v285, %v366
      %v368 = vand.u32 %v367, 4294901760
      %v369 = vsub.f32 %v367, %v368
      %v370 = vand.u32 %v369, 4294901760
      %371 = vmatpush.msra.mxu0 %v370
      %v372 = vand.u32 %v284, 4294901760
      %v373 = vsub.f32 %v284, %v372
      %v374 = vand.u32 %v373, 4294901760
      %v375 = vsub.f32 %v373, %v374
      %v376 = vand.u32 %v375, 4294901760
      %377 = vmatpush.msra.mxu0 %v376
      %v378 = vand.u32 %v283, 4294901760
      %v379 = vsub.f32 %v283, %v378
      %v380 = vand.u32 %v379, 4294901760
      %v381 = vsub.f32 %v379, %v380
      %v382 = vand.u32 %v381, 4294901760
      %383 = vmatpush.msra.mxu0 %v382
      %v384 = vand.u32 %v282, 4294901760
      %v385 = vsub.f32 %v282, %v384
      %v386 = vand.u32 %v385, 4294901760
      %v387 = vsub.f32 %v385, %v386
      %v388 = vand.u32 %v387, 4294901760
      %389 = vmatpush.msra.mxu0 %v388
      %v390 = vand.u32 %v281, 4294901760
      %v391 = vsub.f32 %v281, %v390
      %v392 = vand.u32 %v391, 4294901760
      %v393 = vsub.f32 %v391, %v392
      %v394 = vand.u32 %v393, 4294901760
      %395 = vmatpush.msra.mxu0 %v394
      %v396 = vand.u32 %v280, 4294901760
      %v397 = vsub.f32 %v280, %v396
      %v398 = vand.u32 %v397, 4294901760
      %v399 = vsub.f32 %v397, %v398
      %v400 = vand.u32 %v399, 4294901760
      %401 = vmatpush.msra.mxu0 %v400
      %v402 = vand.u32 %v279, 4294901760
      %v403 = vsub.f32 %v279, %v402
      %v404 = vand.u32 %v403, 4294901760
      %v405 = vsub.f32 %v403, %v404
      %v406 = vand.u32 %v405, 4294901760
      %407 = vmatpush.msra.mxu0 %v406
      %v408 = vand.u32 %v278, 4294901760
      %v409 = vsub.f32 %v278, %v408
      %v410 = vand.u32 %v409, 4294901760
      %v411 = vsub.f32 %v409, %v410
      %v412 = vand.u32 %v411, 4294901760
      %413 = vmatpush.msra.mxu0 %v412
      %v414 = vand.u32 %v277, 4294901760
      %v415 = vsub.f32 %v277, %v414
      %v416 = vand.u32 %v415, 4294901760
      %v417 = vsub.f32 %v415, %v416
      %v418 = vand.u32 %v417, 4294901760
      %419 = vmatpush.msra.mxu0 %v418
      %v420 = vand.u32 %v276, 4294901760
      %v421 = vsub.f32 %v276, %v420
      %v422 = vand.u32 %v421, 4294901760
      %v423 = vsub.f32 %v421, %v422
      %v424 = vand.u32 %v423, 4294901760
      %425 = vmatpush.msra.mxu0 %v424
      %v426 = vand.u32 %v275, 4294901760
      %v427 = vsub.f32 %v275, %v426
      %v428 = vand.u32 %v427, 4294901760
      %v429 = vsub.f32 %v427, %v428
      %v430 = vand.u32 %v429, 4294901760
      %431 = vmatpush.msra.mxu0 %v430
      %v432 = vand.u32 %v274, 4294901760
      %v433 = vsub.f32 %v274, %v432
      %v434 = vand.u32 %v433, 4294901760
      %v435 = vsub.f32 %v433, %v434
      %v436 = vand.u32 %v435, 4294901760
      %437 = vmatpush.msra.mxu0 %v436
      %v438 = vand.u32 %v273, 4294901760
      %v439 = vsub.f32 %v273, %v438
      %v440 = vand.u32 %v439, 4294901760
      %v441 = vsub.f32 %v439, %v440
      %v442 = vand.u32 %v441, 4294901760
      %443 = vmatpush.msra.mxu0 %v442
      %v444 = vand.u32 %v272, 4294901760
      %v445 = vsub.f32 %v272, %v444
      %v446 = vand.u32 %v445, 4294901760
      %v447 = vsub.f32 %v445, %v446
      %v448 = vand.u32 %v447, 4294901760
      %449 = vmatpush.msra.mxu0 %v448
      %450 = vmatmul.f32.gmra.mxu0 %v268
      %v451 = vpop.f32.mrf.mxu0
      %v452 = vadd.f32 %v345, %v451
      %453 = vmatmul.f32.gmra.mxu0 %v270
      %v454 = vpop.f32.mrf.mxu0
      %v455 = vadd.f32 %v352, %v454
      %456 = vdwg.mxu0
      %v457 = vand.u32 %v287, 4294901760
      %v458 = vsub.f32 %v287, %v457
      %459 = vmatpush.msra.mxu0 %v458
      %v460 = vand.u32 %v286, 4294901760
      %v461 = vsub.f32 %v286, %v460
      %462 = vmatpush.msra.mxu0 %v461
      %v463 = vand.u32 %v285, 4294901760
      %v464 = vsub.f32 %v285, %v463
      %465 = vmatpush.msra.mxu0 %v464
      %v466 = vand.u32 %v284, 4294901760
      %v467 = vsub.f32 %v284, %v466
      %468 = vmatpush.msra.mxu0 %v467
      %v469 = vand.u32 %v283, 4294901760
      %v470 = vsub.f32 %v283, %v469
      %471 = vmatpush.msra.mxu0 %v470
      %v472 = vand.u32 %v282, 4294901760
      %v473 = vsub.f32 %v282, %v472
      %474 = vmatpush.msra.mxu0 %v473
      %v475 = vand.u32 %v281, 4294901760
      %v476 = vsub.f32 %v281, %v475
      %477 = vmatpush.msra.mxu0 %v476
      %v478 = vand.u32 %v280, 4294901760
      %v479 = vsub.f32 %v280, %v478
      %480 = vmatpush.msra.mxu0 %v479
      %v481 = vand.u32 %v279, 4294901760
      %v482 = vsub.f32 %v279, %v481
      %483 = vmatpush.msra.mxu0 %v482
      %v484 = vand.u32 %v278, 4294901760
      %v485 = vsub.f32 %v278, %v484
      %486 = vmatpush.msra.mxu0 %v485
      %v487 = vand.u32 %v277, 4294901760
      %v488 = vsub.f32 %v277, %v487
      %489 = vmatpush.msra.mxu0 %v488
      %v490 = vand.u32 %v276, 4294901760
      %v491 = vsub.f32 %v276, %v490
      %492 = vmatpush.msra.mxu0 %v491
      %v493 = vand.u32 %v275, 4294901760
      %v494 = vsub.f32 %v275, %v493
      %495 = vmatpush.msra.mxu0 %v494
      %v496 = vand.u32 %v274, 4294901760
      %v497 = vsub.f32 %v274, %v496
      %498 = vmatpush.msra.mxu0 %v497
      %v499 = vand.u32 %v273, 4294901760
      %v500 = vsub.f32 %v273, %v499
      %501 = vmatpush.msra.mxu0 %v500
      %v502 = vand.u32 %v272, 4294901760
      %v503 = vsub.f32 %v272, %v502
      %504 = vmatpush.msra.mxu0 %v503
      %v505 = vsub.f32 %v268, %v268
      %506 = vmatmul.f32.gmra.mxu0 %v505
      %v507 = vpop.f32.mrf.mxu0
      %v508 = vadd.f32 %v452, %v507
      %v509 = vsub.f32 %v270, %v270
      %510 = vmatmul.f32.gmra.mxu0 %v509
      %v511 = vpop.f32.mrf.mxu0
      %v512 = vadd.f32 %v455, %v511
      %513 = vdwg.mxu0
      %v514 = vand.u32 %v287, 4294901760
      %515 = vmatpush.msra.mxu0 %v514
      %v516 = vand.u32 %v286, 4294901760
      %517 = vmatpush.msra.mxu0 %v516
      %v518 = vand.u32 %v285, 4294901760
      %519 = vmatpush.msra.mxu0 %v518
      %v520 = vand.u32 %v284, 4294901760
      %521 = vmatpush.msra.mxu0 %v520
      %v522 = vand.u32 %v283, 4294901760
      %523 = vmatpush.msra.mxu0 %v522
      %v524 = vand.u32 %v282, 4294901760
      %525 = vmatpush.msra.mxu0 %v524
      %v526 = vand.u32 %v281, 4294901760
      %527 = vmatpush.msra.mxu0 %v526
      %v528 = vand.u32 %v280, 4294901760
      %529 = vmatpush.msra.mxu0 %v528
      %v530 = vand.u32 %v279, 4294901760
      %531 = vmatpush.msra.mxu0 %v530
      %v532 = vand.u32 %v278, 4294901760
      %533 = vmatpush.msra.mxu0 %v532
      %v534 = vand.u32 %v277, 4294901760
      %535 = vmatpush.msra.mxu0 %v534
      %v536 = vand.u32 %v276, 4294901760
      %537 = vmatpush.msra.mxu0 %v536
      %v538 = vand.u32 %v275, 4294901760
      %539 = vmatpush.msra.mxu0 %v538
      %v540 = vand.u32 %v274, 4294901760
      %541 = vmatpush.msra.mxu0 %v540
      %v542 = vand.u32 %v273, 4294901760
      %543 = vmatpush.msra.mxu0 %v542
      %v544 = vand.u32 %v272, 4294901760
      %545 = vmatpush.msra.mxu0 %v544
      %v546 = vsub.f32 %v268, %v268
      %v547 = vand.u32 %v546, 4294901760
      %548 = vmatmul.f32.gmra.mxu0 %v547
      %v549 = vpop.f32.mrf.mxu0
      %v550 = vadd.f32 %v508, %v549
      %v551 = vsub.f32 %v270, %v270
      %v552 = vand.u32 %v551, 4294901760
      %553 = vmatmul.f32.gmra.mxu0 %v552
      %v554 = vpop.f32.mrf.mxu0
      %v555 = vadd.f32 %v512, %v554
      %556 = vdwg.mxu0
      %v557 = vand.u32 %v287, 4294901760
      %v558 = vsub.f32 %v287, %v557
      %v559 = vand.u32 %v558, 4294901760
      %560 = vmatpush.msra.mxu0 %v559
      %v561 = vand.u32 %v286, 4294901760
      %v562 = vsub.f32 %v286, %v561
      %v563 = vand.u32 %v562, 4294901760
      %564 = vmatpush.msra.mxu0 %v563
      %v565 = vand.u32 %v285, 4294901760
      %v566 = vsub.f32 %v285, %v565
      %v567 = vand.u32 %v566, 4294901760
      %568 = vmatpush.msra.mxu0 %v567
      %v569 = vand.u32 %v284, 4294901760
      %v570 = vsub.f32 %v284, %v569
      %v571 = vand.u32 %v570, 4294901760
      %572 = vmatpush.msra.mxu0 %v571
      %v573 = vand.u32 %v283, 4294901760
      %v574 = vsub.f32 %v283, %v573
      %v575 = vand.u32 %v574, 4294901760
      %576 = vmatpush.msra.mxu0 %v575
      %v577 = vand.u32 %v282, 4294901760
      %v578 = vsub.f32 %v282, %v577
      %v579 = vand.u32 %v578, 4294901760
      %580 = vmatpush.msra.mxu0 %v579
      %v581 = vand.u32 %v281, 4294901760
      %v582 = vsub.f32 %v281, %v581
      %v583 = vand.u32 %v582, 4294901760
      %584 = vmatpush.msra.mxu0 %v583
      %v585 = vand.u32 %v280, 4294901760
      %v586 = vsub.f32 %v280, %v585
      %v587 = vand.u32 %v586, 4294901760
      %588 = vmatpush.msra.mxu0 %v587
      %v589 = vand.u32 %v279, 4294901760
      %v590 = vsub.f32 %v279, %v589
      %v591 = vand.u32 %v590, 4294901760
      %592 = vmatpush.msra.mxu0 %v591
      %v593 = vand.u32 %v278, 4294901760
      %v594 = vsub.f32 %v278, %v593
      %v595 = vand.u32 %v594, 4294901760
      %596 = vmatpush.msra.mxu0 %v595
      %v597 = vand.u32 %v277, 4294901760
      %v598 = vsub.f32 %v277, %v597
      %v599 = vand.u32 %v598, 4294901760
      %600 = vmatpush.msra.mxu0 %v599
      %v601 = vand.u32 %v276, 4294901760
      %v602 = vsub.f32 %v276, %v601
      %v603 = vand.u32 %v602, 4294901760
      %604 = vmatpush.msra.mxu0 %v603
      %v605 = vand.u32 %v275, 4294901760
      %v606 = vsub.f32 %v275, %v605
      %v607 = vand.u32 %v606, 4294901760
      %608 = vmatpush.msra.mxu0 %v607
      %v609 = vand.u32 %v274, 4294901760
      %v610 = vsub.f32 %v274, %v609
      %v611 = vand.u32 %v610, 4294901760
      %612 = vmatpush.msra.mxu0 %v611
      %v613 = vand.u32 %v273, 4294901760
      %v614 = vsub.f32 %v273, %v613
      %v615 = vand.u32 %v614, 4294901760
      %616 = vmatpush.msra.mxu0 %v615
      %v617 = vand.u32 %v272, 4294901760
      %v618 = vsub.f32 %v272, %v617
      %v619 = vand.u32 %v618, 4294901760
      %620 = vmatpush.msra.mxu0 %v619
      %621 = vmatmul.f32.gmra.mxu0 %v268
      %v622 = vpop.f32.mrf.mxu0
      %v623 = vadd.f32 %v550, %v622
      %624 = vmatmul.f32.gmra.mxu0 %v270
      %v625 = vpop.f32.mrf.mxu0
      %v626 = vadd.f32 %v555, %v625
      %627 = vdwg.mxu0
      %v628 = vand.u32 %v287, 4294901760
      %629 = vmatpush.msra.mxu0 %v628
      %v630 = vand.u32 %v286, 4294901760
      %631 = vmatpush.msra.mxu0 %v630
      %v632 = vand.u32 %v285, 4294901760
      %633 = vmatpush.msra.mxu0 %v632
      %v634 = vand.u32 %v284, 4294901760
      %635 = vmatpush.msra.mxu0 %v634
      %v636 = vand.u32 %v283, 4294901760
      %637 = vmatpush.msra.mxu0 %v636
      %v638 = vand.u32 %v282, 4294901760
      %639 = vmatpush.msra.mxu0 %v638
      %v640 = vand.u32 %v281, 4294901760
      %641 = vmatpush.msra.mxu0 %v640
      %v642 = vand.u32 %v280, 4294901760
      %643 = vmatpush.msra.mxu0 %v642
      %v644 = vand.u32 %v279, 4294901760
      %645 = vmatpush.msra.mxu0 %v644
      %v646 = vand.u32 %v278, 4294901760
      %647 = vmatpush.msra.mxu0 %v646
      %v648 = vand.u32 %v277, 4294901760
      %649 = vmatpush.msra.mxu0 %v648
      %v650 = vand.u32 %v276, 4294901760
      %651 = vmatpush.msra.mxu0 %v650
      %v652 = vand.u32 %v275, 4294901760
      %653 = vmatpush.msra.mxu0 %v652
      %v654 = vand.u32 %v274, 4294901760
      %655 = vmatpush.msra.mxu0 %v654
      %v656 = vand.u32 %v273, 4294901760
      %657 = vmatpush.msra.mxu0 %v656
      %v658 = vand.u32 %v272, 4294901760
      %659 = vmatpush.msra.mxu0 %v658
      %660 = vmatmul.f32.gmra.mxu0 %v268
      %v661 = vpop.f32.mrf.mxu0
      %v662 = vadd.f32 %v623, %v661
      %663 = vmatmul.f32.gmra.mxu0 %v270
      %v664 = vpop.f32.mrf.mxu0
      %v665 = vadd.f32 %v626, %v664
      %666 = vdwg.mxu0
      %v667 = vand.u32 %v303, 4294901760
      %668 = vmatpush.msra.mxu0 %v667
      %v669 = vand.u32 %v302, 4294901760
      %670 = vmatpush.msra.mxu0 %v669
      %v671 = vand.u32 %v301, 4294901760
      %672 = vmatpush.msra.mxu0 %v671
      %v673 = vand.u32 %v300, 4294901760
      %674 = vmatpush.msra.mxu0 %v673
      %v675 = vand.u32 %v299, 4294901760
      %676 = vmatpush.msra.mxu0 %v675
      %v677 = vand.u32 %v298, 4294901760
      %678 = vmatpush.msra.mxu0 %v677
      %v679 = vand.u32 %v297, 4294901760
      %680 = vmatpush.msra.mxu0 %v679
      %v681 = vand.u32 %v296, 4294901760
      %682 = vmatpush.msra.mxu0 %v681
      %v683 = vand.u32 %v295, 4294901760
      %684 = vmatpush.msra.mxu0 %v683
      %v685 = vand.u32 %v294, 4294901760
      %686 = vmatpush.msra.mxu0 %v685
      %v687 = vand.u32 %v293, 4294901760
      %688 = vmatpush.msra.mxu0 %v687
      %v689 = vand.u32 %v292, 4294901760
      %690 = vmatpush.msra.mxu0 %v689
      %v691 = vand.u32 %v291, 4294901760
      %692 = vmatpush.msra.mxu0 %v691
      %v693 = vand.u32 %v290, 4294901760
      %694 = vmatpush.msra.mxu0 %v693
      %v695 = vand.u32 %v289, 4294901760
      %696 = vmatpush.msra.mxu0 %v695
      %v697 = vand.u32 %v288, 4294901760
      %698 = vmatpush.msra.mxu0 %v697
      %v699 = vsub.f32 %v269, %v269
      %v700 = vand.u32 %v699, 4294901760
      %v701 = vsub.f32 %v699, %v700
      %v702 = vand.u32 %v701, 4294901760
      %703 = vmatmul.f32.gmra.mxu0 %v702
      %v704 = vpop.f32.mrf.mxu0
      %v705 = vadd.f32 %v662, %v704
      %v706 = vsub.f32 %v271, %v271
      %v707 = vand.u32 %v706, 4294901760
      %v708 = vsub.f32 %v706, %v707
      %v709 = vand.u32 %v708, 4294901760
      %710 = vmatmul.f32.gmra.mxu0 %v709
      %v711 = vpop.f32.mrf.mxu0
      %v712 = vadd.f32 %v665, %v711
      %713 = vdwg.mxu0
      %v714 = vand.u32 %v303, 4294901760
      %v715 = vsub.f32 %v303, %v714
      %v716 = vand.u32 %v715, 4294901760
      %v717 = vsub.f32 %v715, %v716
      %v718 = vand.u32 %v717, 4294901760
      %719 = vmatpush.msra.mxu0 %v718
      %v720 = vand.u32 %v302, 4294901760
      %v721 = vsub.f32 %v302, %v720
      %v722 = vand.u32 %v721, 4294901760
      %v723 = vsub.f32 %v721, %v722
      %v724 = vand.u32 %v723, 4294901760
      %725 = vmatpush.msra.mxu0 %v724
      %v726 = vand.u32 %v301, 4294901760
      %v727 = vsub.f32 %v301, %v726
      %v728 = vand.u32 %v727, 4294901760
      %v729 = vsub.f32 %v727, %v728
      %v730 = vand.u32 %v729, 4294901760
      %731 = vmatpush.msra.mxu0 %v730
      %v732 = vand.u32 %v300, 4294901760
      %v733 = vsub.f32 %v300, %v732
      %v734 = vand.u32 %v733, 4294901760
      %v735 = vsub.f32 %v733, %v734
      %v736 = vand.u32 %v735, 4294901760
      %737 = vmatpush.msra.mxu0 %v736
      %v738 = vand.u32 %v299, 4294901760
      %v739 = vsub.f32 %v299, %v738
      %v740 = vand.u32 %v739, 4294901760
      %v741 = vsub.f32 %v739, %v740
      %v742 = vand.u32 %v741, 4294901760
      %743 = vmatpush.msra.mxu0 %v742
      %v744 = vand.u32 %v298, 4294901760
      %v745 = vsub.f32 %v298, %v744
      %v746 = vand.u32 %v745, 4294901760
      %v747 = vsub.f32 %v745, %v746
      %v748 = vand.u32 %v747, 4294901760
      %749 = vmatpush.msra.mxu0 %v748
      %v750 = vand.u32 %v297, 4294901760
      %v751 = vsub.f32 %v297, %v750
      %v752 = vand.u32 %v751, 4294901760
      %v753 = vsub.f32 %v751, %v752
      %v754 = vand.u32 %v753, 4294901760
      %755 = vmatpush.msra.mxu0 %v754
      %v756 = vand.u32 %v296, 4294901760
      %v757 = vsub.f32 %v296, %v756
      %v758 = vand.u32 %v757, 4294901760
      %v759 = vsub.f32 %v757, %v758
      %v760 = vand.u32 %v759, 4294901760
      %761 = vmatpush.msra.mxu0 %v760
      %v762 = vand.u32 %v295, 4294901760
      %v763 = vsub.f32 %v295, %v762
      %v764 = vand.u32 %v763, 4294901760
      %v765 = vsub.f32 %v763, %v764
      %v766 = vand.u32 %v765, 4294901760
      %767 = vmatpush.msra.mxu0 %v766
      %v768 = vand.u32 %v294, 4294901760
      %v769 = vsub.f32 %v294, %v768
      %v770 = vand.u32 %v769, 4294901760
      %v771 = vsub.f32 %v769, %v770
      %v772 = vand.u32 %v771, 4294901760
      %773 = vmatpush.msra.mxu0 %v772
      %v774 = vand.u32 %v293, 4294901760
      %v775 = vsub.f32 %v293, %v774
      %v776 = vand.u32 %v775, 4294901760
      %v777 = vsub.f32 %v775, %v776
      %v778 = vand.u32 %v777, 4294901760
      %779 = vmatpush.msra.mxu0 %v778
      %v780 = vand.u32 %v292, 4294901760
      %v781 = vsub.f32 %v292, %v780
      %v782 = vand.u32 %v781, 4294901760
      %v783 = vsub.f32 %v781, %v782
      %v784 = vand.u32 %v783, 4294901760
      %785 = vmatpush.msra.mxu0 %v784
      %v786 = vand.u32 %v291, 4294901760
      %v787 = vsub.f32 %v291, %v786
      %v788 = vand.u32 %v787, 4294901760
      %v789 = vsub.f32 %v787, %v788
      %v790 = vand.u32 %v789, 4294901760
      %791 = vmatpush.msra.mxu0 %v790
      %v792 = vand.u32 %v290, 4294901760
      %v793 = vsub.f32 %v290, %v792
      %v794 = vand.u32 %v793, 4294901760
      %v795 = vsub.f32 %v793, %v794
      %v796 = vand.u32 %v795, 4294901760
      %797 = vmatpush.msra.mxu0 %v796
      %v798 = vand.u32 %v289, 4294901760
      %v799 = vsub.f32 %v289, %v798
      %v800 = vand.u32 %v799, 4294901760
      %v801 = vsub.f32 %v799, %v800
      %v802 = vand.u32 %v801, 4294901760
      %803 = vmatpush.msra.mxu0 %v802
      %v804 = vand.u32 %v288, 4294901760
      %v805 = vsub.f32 %v288, %v804
      %v806 = vand.u32 %v805, 4294901760
      %v807 = vsub.f32 %v805, %v806
      %v808 = vand.u32 %v807, 4294901760
      %809 = vmatpush.msra.mxu0 %v808
      %810 = vmatmul.f32.gmra.mxu0 %v269
      %v811 = vpop.f32.mrf.mxu0
      %v812 = vadd.f32 %v705, %v811
      %813 = vmatmul.f32.gmra.mxu0 %v271
      %v814 = vpop.f32.mrf.mxu0
      %v815 = vadd.f32 %v712, %v814
      %816 = vdwg.mxu0
      %v817 = vand.u32 %v303, 4294901760
      %v818 = vsub.f32 %v303, %v817
      %819 = vmatpush.msra.mxu0 %v818
      %v820 = vand.u32 %v302, 4294901760
      %v821 = vsub.f32 %v302, %v820
      %822 = vmatpush.msra.mxu0 %v821
      %v823 = vand.u32 %v301, 4294901760
      %v824 = vsub.f32 %v301, %v823
      %825 = vmatpush.msra.mxu0 %v824
      %v826 = vand.u32 %v300, 4294901760
      %v827 = vsub.f32 %v300, %v826
      %828 = vmatpush.msra.mxu0 %v827
      %v829 = vand.u32 %v299, 4294901760
      %v830 = vsub.f32 %v299, %v829
      %831 = vmatpush.msra.mxu0 %v830
      %v832 = vand.u32 %v298, 4294901760
      %v833 = vsub.f32 %v298, %v832
      %834 = vmatpush.msra.mxu0 %v833
      %v835 = vand.u32 %v297, 4294901760
      %v836 = vsub.f32 %v297, %v835
      %837 = vmatpush.msra.mxu0 %v836
      %v838 = vand.u32 %v296, 4294901760
      %v839 = vsub.f32 %v296, %v838
      %840 = vmatpush.msra.mxu0 %v839
      %v841 = vand.u32 %v295, 4294901760
      %v842 = vsub.f32 %v295, %v841
      %843 = vmatpush.msra.mxu0 %v842
      %v844 = vand.u32 %v294, 4294901760
      %v845 = vsub.f32 %v294, %v844
      %846 = vmatpush.msra.mxu0 %v845
      %v847 = vand.u32 %v293, 4294901760
      %v848 = vsub.f32 %v293, %v847
      %849 = vmatpush.msra.mxu0 %v848
      %v850 = vand.u32 %v292, 4294901760
      %v851 = vsub.f32 %v292, %v850
      %852 = vmatpush.msra.mxu0 %v851
      %v853 = vand.u32 %v291, 4294901760
      %v854 = vsub.f32 %v291, %v853
      %855 = vmatpush.msra.mxu0 %v854
      %v856 = vand.u32 %v290, 4294901760
      %v857 = vsub.f32 %v290, %v856
      %858 = vmatpush.msra.mxu0 %v857
      %v859 = vand.u32 %v289, 4294901760
      %v860 = vsub.f32 %v289, %v859
      %861 = vmatpush.msra.mxu0 %v860
      %v862 = vand.u32 %v288, 4294901760
      %v863 = vsub.f32 %v288, %v862
      %864 = vmatpush.msra.mxu0 %v863
      %v865 = vsub.f32 %v269, %v269
      %866 = vmatmul.f32.gmra.mxu0 %v865
      %v867 = vpop.f32.mrf.mxu0
      %v868 = vadd.f32 %v812, %v867
      %v869 = vsub.f32 %v271, %v271
      %870 = vmatmul.f32.gmra.mxu0 %v869
      %v871 = vpop.f32.mrf.mxu0
      %v872 = vadd.f32 %v815, %v871
      %873 = vdwg.mxu0
      %v874 = vand.u32 %v303, 4294901760
      %875 = vmatpush.msra.mxu0 %v874
      %v876 = vand.u32 %v302, 4294901760
      %877 = vmatpush.msra.mxu0 %v876
      %v878 = vand.u32 %v301, 4294901760
      %879 = vmatpush.msra.mxu0 %v878
      %v880 = vand.u32 %v300, 4294901760
      %881 = vmatpush.msra.mxu0 %v880
      %v882 = vand.u32 %v299, 4294901760
      %883 = vmatpush.msra.mxu0 %v882
      %v884 = vand.u32 %v298, 4294901760
      %885 = vmatpush.msra.mxu0 %v884
      %v886 = vand.u32 %v297, 4294901760
      %887 = vmatpush.msra.mxu0 %v886
      %v888 = vand.u32 %v296, 4294901760
      %889 = vmatpush.msra.mxu0 %v888
      %v890 = vand.u32 %v295, 4294901760
      %891 = vmatpush.msra.mxu0 %v890
      %v892 = vand.u32 %v294, 4294901760
      %893 = vmatpush.msra.mxu0 %v892
      %v894 = vand.u32 %v293, 4294901760
      %895 = vmatpush.msra.mxu0 %v894
      %v896 = vand.u32 %v292, 4294901760
      %897 = vmatpush.msra.mxu0 %v896
      %v898 = vand.u32 %v291, 4294901760
      %899 = vmatpush.msra.mxu0 %v898
      %v900 = vand.u32 %v290, 4294901760
      %901 = vmatpush.msra.mxu0 %v900
      %v902 = vand.u32 %v289, 4294901760
      %903 = vmatpush.msra.mxu0 %v902
      %v904 = vand.u32 %v288, 4294901760
      %905 = vmatpush.msra.mxu0 %v904
      %v906 = vsub.f32 %v269, %v269
      %v907 = vand.u32 %v906, 4294901760
      %908 = vmatmul.f32.gmra.mxu0 %v907
      %v909 = vpop.f32.mrf.mxu0
      %v910 = vadd.f32 %v868, %v909
      %v911 = vsub.f32 %v271, %v271
      %v912 = vand.u32 %v911, 4294901760
      %913 = vmatmul.f32.gmra.mxu0 %v912
      %v914 = vpop.f32.mrf.mxu0
      %v915 = vadd.f32 %v872, %v914
      %916 = vdwg.mxu0
      %v917 = vand.u32 %v303, 4294901760
      %v918 = vsub.f32 %v303, %v917
      %v919 = vand.u32 %v918, 4294901760
      %920 = vmatpush.msra.mxu0 %v919
      %v921 = vand.u32 %v302, 4294901760
      %v922 = vsub.f32 %v302, %v921
      %v923 = vand.u32 %v922, 4294901760
      %924 = vmatpush.msra.mxu0 %v923
      %v925 = vand.u32 %v301, 4294901760
      %v926 = vsub.f32 %v301, %v925
      %v927 = vand.u32 %v926, 4294901760
      %928 = vmatpush.msra.mxu0 %v927
      %v929 = vand.u32 %v300, 4294901760
      %v930 = vsub.f32 %v300, %v929
      %v931 = vand.u32 %v930, 4294901760
      %932 = vmatpush.msra.mxu0 %v931
      %v933 = vand.u32 %v299, 4294901760
      %v934 = vsub.f32 %v299, %v933
      %v935 = vand.u32 %v934, 4294901760
      %936 = vmatpush.msra.mxu0 %v935
      %v937 = vand.u32 %v298, 4294901760
      %v938 = vsub.f32 %v298, %v937
      %v939 = vand.u32 %v938, 4294901760
      %940 = vmatpush.msra.mxu0 %v939
      %v941 = vand.u32 %v297, 4294901760
      %v942 = vsub.f32 %v297, %v941
      %v943 = vand.u32 %v942, 4294901760
      %944 = vmatpush.msra.mxu0 %v943
      %v945 = vand.u32 %v296, 4294901760
      %v946 = vsub.f32 %v296, %v945
      %v947 = vand.u32 %v946, 4294901760
      %948 = vmatpush.msra.mxu0 %v947
      %v949 = vand.u32 %v295, 4294901760
      %v950 = vsub.f32 %v295, %v949
      %v951 = vand.u32 %v950, 4294901760
      %952 = vmatpush.msra.mxu0 %v951
      %v953 = vand.u32 %v294, 4294901760
      %v954 = vsub.f32 %v294, %v953
      %v955 = vand.u32 %v954, 4294901760
      %956 = vmatpush.msra.mxu0 %v955
      %v957 = vand.u32 %v293, 4294901760
      %v958 = vsub.f32 %v293, %v957
      %v959 = vand.u32 %v958, 4294901760
      %960 = vmatpush.msra.mxu0 %v959
      %v961 = vand.u32 %v292, 4294901760
      %v962 = vsub.f32 %v292, %v961
      %v963 = vand.u32 %v962, 4294901760
      %964 = vmatpush.msra.mxu0 %v963
      %v965 = vand.u32 %v291, 4294901760
      %v966 = vsub.f32 %v291, %v965
      %v967 = vand.u32 %v966, 4294901760
      %968 = vmatpush.msra.mxu0 %v967
      %v969 = vand.u32 %v290, 4294901760
      %v970 = vsub.f32 %v290, %v969
      %v971 = vand.u32 %v970, 4294901760
      %972 = vmatpush.msra.mxu0 %v971
      %v973 = vand.u32 %v289, 4294901760
      %v974 = vsub.f32 %v289, %v973
      %v975 = vand.u32 %v974, 4294901760
      %976 = vmatpush.msra.mxu0 %v975
      %v977 = vand.u32 %v288, 4294901760
      %v978 = vsub.f32 %v288, %v977
      %v979 = vand.u32 %v978, 4294901760
      %980 = vmatpush.msra.mxu0 %v979
      %981 = vmatmul.f32.gmra.mxu0 %v269
      %v982 = vpop.f32.mrf.mxu0
      %v983 = vadd.f32 %v910, %v982
      %984 = vmatmul.f32.gmra.mxu0 %v271
      %v985 = vpop.f32.mrf.mxu0
      %v986 = vadd.f32 %v915, %v985
      %987 = vdwg.mxu0
      %v988 = vand.u32 %v303, 4294901760
      %989 = vmatpush.msra.mxu0 %v988
      %v990 = vand.u32 %v302, 4294901760
      %991 = vmatpush.msra.mxu0 %v990
      %v992 = vand.u32 %v301, 4294901760
      %993 = vmatpush.msra.mxu0 %v992
      %v994 = vand.u32 %v300, 4294901760
      %995 = vmatpush.msra.mxu0 %v994
      %v996 = vand.u32 %v299, 4294901760
      %997 = vmatpush.msra.mxu0 %v996
      %v998 = vand.u32 %v298, 4294901760
      %999 = vmatpush.msra.mxu0 %v998
      %v1000 = vand.u32 %v297, 4294901760
      %1001 = vmatpush.msra.mxu0 %v1000
      %v1002 = vand.u32 %v296, 4294901760
      %1003 = vmatpush.msra.mxu0 %v1002
      %v1004 = vand.u32 %v295, 4294901760
      %1005 = vmatpush.msra.mxu0 %v1004
      %v1006 = vand.u32 %v294, 4294901760
      %1007 = vmatpush.msra.mxu0 %v1006
      %v1008 = vand.u32 %v293, 4294901760
      %1009 = vmatpush.msra.mxu0 %v1008
      %v1010 = vand.u32 %v292, 4294901760
      %1011 = vmatpush.msra.mxu0 %v1010
      %v1012 = vand.u32 %v291, 4294901760
      %1013 = vmatpush.msra.mxu0 %v1012
      %v1014 = vand.u32 %v290, 4294901760
      %1015 = vmatpush.msra.mxu0 %v1014
      %v1016 = vand.u32 %v289, 4294901760
      %1017 = vmatpush.msra.mxu0 %v1016
      %v1018 = vand.u32 %v288, 4294901760
      %1019 = vmatpush.msra.mxu0 %v1018
      %1020 = vmatmul.f32.gmra.mxu0 %v269
      %v1021 = vpop.f32.mrf.mxu0
      %v1022 = vadd.f32 %v983, %v1021
      %1023 = vmatmul.f32.gmra.mxu0 %v271
      %v1024 = vpop.f32.mrf.mxu0
      %v1025 = vadd.f32 %v986, %v1024
      %1026 = vdwg.mxu0
      %v1027 = vmax.f32 %v1022, 0.0
      %v1028 = vmax.f32 %v1025, 0.0
      %v1029 = vxor.u32 %v1022, 2147483648
      %v1030 = vxor.u32 %v1025, 2147483648
      %v1031 = vmul.f32 %v1029, 1.442695
      %v1032 = vpow.pop %v1031
      %v1033 = vmul.f32 %v1030, 1.442695
      %v1034 = vpow.pop %v1033
      %v1035 = vadd.f32 %v1032, 1.0
      %v1036 = vadd.f32 %v1034, 1.0
      %v1037 = vrcp.pop %v1035
      %v1038 = vmul.f32 %v1035, %v1037
      %v1039 = vsub.f32 1.0, %v1038
      %v1040 = vmul.f32 %v1037, %v1039
      %v1041 = vadd.f32 %v1037, %v1040
      %vm1042 = vweird.f32 %v1035
      %vm1043 = vweird.f32 %v1037
      %vm1044 = vmor %vm1042, %vm1043
      %v1045 = vsel %vm1044, %v1037, %v1041
      %v1046 = vand.u32 2147483647, %v1035
      %vm1047 = vcmp.eq.f32.partialorder %v1046, 8.507059e+37
      %v1048 = vand.u32 %v1035, 2147483648
      %v1049 = vor.u32 1.1754944e-38, %v1048
      %v1050 = vsel %vm1047, %v1049, %v1045
      %v1051 = vmul.f32 1.0, %v1050
      %v1052 = vrcp.pop %v1036
      %v1053 = vmul.f32 %v1036, %v1052
      %v1054 = vsub.f32 1.0, %v1053
      %v1055 = vmul.f32 %v1052, %v1054
      %v1056 = vadd.f32 %v1052, %v1055
      %vm1057 = vweird.f32 %v1036
      %vm1058 = vweird.f32 %v1052
      %vm1059 = vmor %vm1057, %vm1058
      %v1060 = vsel %vm1059, %v1052, %v1056
      %v1061 = vand.u32 2147483647, %v1036
      %vm1062 = vcmp.eq.f32.partialorder %v1061, 8.507059e+37
      %v1063 = vand.u32 %v1036, 2147483648
      %v1064 = vor.u32 1.1754944e-38, %v1063
      %v1065 = vsel %vm1062, %v1064, %v1060
      %v1066 = vmul.f32 1.0, %v1065
      %1069 = vrot.lane.b32.xlu0 %v1027, 64
      %v1070 = vpop.permute.xlu0 %1069
      %1071 = vrot.lane.b32.xlu0 %v1028, 64
      %v1072 = vpop.permute.xlu0 %1071
      %v1075 = vmul.f32 %v1051, %v1070
      %v1076 = vmul.f32 %v1066, %v1072
      %v1077 = vsub.f32 1.0, %v1051
      %v1078 = vsub.f32 1.0, %v1066
      %1081 = vrot.lane.b32.xlu0 %v1022, 32
      %v1082 = vpop.permute.xlu0 %1081
      %1083 = vrot.lane.b32.xlu0 %v1025, 32
      %v1084 = vpop.permute.xlu0 %1083
      %v1087 = vmul.f32 %v1077, %v1082
      %v1088 = vmul.f32 %v1078, %v1084
      %v1089 = vadd.f32 %v1075, %v1087
      %v1090 = vadd.f32 %v1076, %v1088
      %v1092 = vperm.slane %v265, 0
      %1096 = vrot.lane.b32.xlu0 %v1089, 64
      %v1097 = vpop.permute.xlu0 %1096
      %1098 = vrot.lane.b32.xlu0 %v1090, 64
      %v1099 = vpop.permute.xlu0 %1098
      %vm1100 = vcmask 261120
      %v1101 = vsel %vm1100, %v1097, 0
      %v1103 = vsel %vm1100, %v1099, 0
      %1105 = vmatpush.msra.mxu0 0.0
      %1106 = vmatpush.msra.mxu0 0.0
      %1107 = vmatpush.msra.mxu0 0.0
      %1108 = vmatpush.msra.mxu0 0.0
      %1109 = vmatpush.msra.mxu0 0.0
      %1110 = vmatpush.msra.mxu0 0.0
      %1111 = vmatpush.msra.mxu0 0.0
      %1112 = vmatpush.msra.mxu0 0.0
      %1113 = vmatpush.msra.mxu0 0.0
      %1114 = vmatpush.msra.mxu0 0.0
      %1115 = vmatpush.msra.mxu0 0.0
      %1116 = vmatpush.msra.mxu0 0.0
      %v1117 = vand.u32 %v263, 4294901760
      %1118 = vmatpush.msra.mxu0 %v1117
      %v1119 = vand.u32 %v262, 4294901760
      %1120 = vmatpush.msra.mxu0 %v1119
      %v1121 = vand.u32 %v261, 4294901760
      %1122 = vmatpush.msra.mxu0 %v1121
      %v1123 = vand.u32 %v260, 4294901760
      %1124 = vmatpush.msra.mxu0 %v1123
      %v1125 = vand.u32 %v1101, 4294901760
      %v1126 = vsub.f32 %v1101, %v1125
      %v1127 = vand.u32 %v1126, 4294901760
      %v1128 = vsub.f32 %v1126, %v1127
      %v1129 = vand.u32 %v1128, 4294901760
      %1130 = vmatmul.f32.gmra.mxu0 %v1129
      %v1131 = vpop.f32.mrf.mxu0
      %v1132 = vadd.f32 %v1092, %v1131
      %v1133 = vand.u32 %v1103, 4294901760
      %v1134 = vsub.f32 %v1103, %v1133
      %v1135 = vand.u32 %v1134, 4294901760
      %v1136 = vsub.f32 %v1134, %v1135
      %v1137 = vand.u32 %v1136, 4294901760
      %1138 = vmatmul.f32.gmra.mxu0 %v1137
      %v1139 = vpop.f32.mrf.mxu0
      %v1140 = vadd.f32 %v1092, %v1139
      %1141 = vdwg.mxu0
      %1142 = vmatpush.msra.mxu0 0.0
      %1143 = vmatpush.msra.mxu0 0.0
      %1144 = vmatpush.msra.mxu0 0.0
      %1145 = vmatpush.msra.mxu0 0.0
      %1146 = vmatpush.msra.mxu0 0.0
      %1147 = vmatpush.msra.mxu0 0.0
      %1148 = vmatpush.msra.mxu0 0.0
      %1149 = vmatpush.msra.mxu0 0.0
      %1150 = vmatpush.msra.mxu0 0.0
      %1151 = vmatpush.msra.mxu0 0.0
      %1152 = vmatpush.msra.mxu0 0.0
      %1153 = vmatpush.msra.mxu0 0.0
      %v1154 = vand.u32 %v263, 4294901760
      %v1155 = vsub.f32 %v263, %v1154
      %v1156 = vand.u32 %v1155, 4294901760
      %v1157 = vsub.f32 %v1155, %v1156
      %v1158 = vand.u32 %v1157, 4294901760
      %1159 = vmatpush.msra.mxu0 %v1158
      %v1160 = vand.u32 %v262, 4294901760
      %v1161 = vsub.f32 %v262, %v1160
      %v1162 = vand.u32 %v1161, 4294901760
      %v1163 = vsub.f32 %v1161, %v1162
      %v1164 = vand.u32 %v1163, 4294901760
      %1165 = vmatpush.msra.mxu0 %v1164
      %v1166 = vand.u32 %v261, 4294901760
      %v1167 = vsub.f32 %v261, %v1166
      %v1168 = vand.u32 %v1167, 4294901760
      %v1169 = vsub.f32 %v1167, %v1168
      %v1170 = vand.u32 %v1169, 4294901760
      %1171 = vmatpush.msra.mxu0 %v1170
      %v1172 = vand.u32 %v260, 4294901760
      %v1173 = vsub.f32 %v260, %v1172
      %v1174 = vand.u32 %v1173, 4294901760
      %v1175 = vsub.f32 %v1173, %v1174
      %v1176 = vand.u32 %v1175, 4294901760
      %1177 = vmatpush.msra.mxu0 %v1176
      %v1178 = vand.u32 %v1101, 4294901760
      %1179 = vmatmul.f32.gmra.mxu0 %v1178
      %v1180 = vpop.f32.mrf.mxu0
      %v1181 = vadd.f32 %v1132, %v1180
      %v1182 = vand.u32 %v1103, 4294901760
      %1183 = vmatmul.f32.gmra.mxu0 %v1182
      %v1184 = vpop.f32.mrf.mxu0
      %v1185 = vadd.f32 %v1140, %v1184
      %1186 = vdwg.mxu0
      %1187 = vmatpush.msra.mxu0 0.0
      %1188 = vmatpush.msra.mxu0 0.0
      %1189 = vmatpush.msra.mxu0 0.0
      %1190 = vmatpush.msra.mxu0 0.0
      %1191 = vmatpush.msra.mxu0 0.0
      %1192 = vmatpush.msra.mxu0 0.0
      %1193 = vmatpush.msra.mxu0 0.0
      %1194 = vmatpush.msra.mxu0 0.0
      %1195 = vmatpush.msra.mxu0 0.0
      %1196 = vmatpush.msra.mxu0 0.0
      %1197 = vmatpush.msra.mxu0 0.0
      %1198 = vmatpush.msra.mxu0 0.0
      %v1199 = vand.u32 %v263, 4294901760
      %v1200 = vsub.f32 %v263, %v1199
      %1201 = vmatpush.msra.mxu0 %v1200
      %v1202 = vand.u32 %v262, 4294901760
      %v1203 = vsub.f32 %v262, %v1202
      %1204 = vmatpush.msra.mxu0 %v1203
      %v1205 = vand.u32 %v261, 4294901760
      %v1206 = vsub.f32 %v261, %v1205
      %1207 = vmatpush.msra.mxu0 %v1206
      %v1208 = vand.u32 %v260, 4294901760
      %v1209 = vsub.f32 %v260, %v1208
      %1210 = vmatpush.msra.mxu0 %v1209
      %v1211 = vand.u32 %v1101, 4294901760
      %v1212 = vsub.f32 %v1101, %v1211
      %1213 = vmatmul.f32.gmra.mxu0 %v1212
      %v1214 = vpop.f32.mrf.mxu0
      %v1215 = vadd.f32 %v1181, %v1214
      %v1216 = vand.u32 %v1103, 4294901760
      %v1217 = vsub.f32 %v1103, %v1216
      %1218 = vmatmul.f32.gmra.mxu0 %v1217
      %v1219 = vpop.f32.mrf.mxu0
      %v1220 = vadd.f32 %v1185, %v1219
      %1221 = vdwg.mxu0
      %1222 = vmatpush.msra.mxu0 0.0
      %1223 = vmatpush.msra.mxu0 0.0
      %1224 = vmatpush.msra.mxu0 0.0
      %1225 = vmatpush.msra.mxu0 0.0
      %1226 = vmatpush.msra.mxu0 0.0
      %1227 = vmatpush.msra.mxu0 0.0
      %1228 = vmatpush.msra.mxu0 0.0
      %1229 = vmatpush.msra.mxu0 0.0
      %1230 = vmatpush.msra.mxu0 0.0
      %1231 = vmatpush.msra.mxu0 0.0
      %1232 = vmatpush.msra.mxu0 0.0
      %1233 = vmatpush.msra.mxu0 0.0
      %v1234 = vand.u32 %v263, 4294901760
      %1235 = vmatpush.msra.mxu0 %v1234
      %v1236 = vand.u32 %v262, 4294901760
      %1237 = vmatpush.msra.mxu0 %v1236
      %v1238 = vand.u32 %v261, 4294901760
      %1239 = vmatpush.msra.mxu0 %v1238
      %v1240 = vand.u32 %v260, 4294901760
      %1241 = vmatpush.msra.mxu0 %v1240
      %v1242 = vand.u32 %v1101, 4294901760
      %v1243 = vsub.f32 %v1101, %v1242
      %v1244 = vand.u32 %v1243, 4294901760
      %1245 = vmatmul.f32.gmra.mxu0 %v1244
      %v1246 = vpop.f32.mrf.mxu0
      %v1247 = vadd.f32 %v1215, %v1246
      %v1248 = vand.u32 %v1103, 4294901760
      %v1249 = vsub.f32 %v1103, %v1248
      %v1250 = vand.u32 %v1249, 4294901760
      %1251 = vmatmul.f32.gmra.mxu0 %v1250
      %v1252 = vpop.f32.mrf.mxu0
      %v1253 = vadd.f32 %v1220, %v1252
      %1254 = vdwg.mxu0
      %1255 = vmatpush.msra.mxu0 0.0
      %1256 = vmatpush.msra.mxu0 0.0
      %1257 = vmatpush.msra.mxu0 0.0
      %1258 = vmatpush.msra.mxu0 0.0
      %1259 = vmatpush.msra.mxu0 0.0
      %1260 = vmatpush.msra.mxu0 0.0
      %1261 = vmatpush.msra.mxu0 0.0
      %1262 = vmatpush.msra.mxu0 0.0
      %1263 = vmatpush.msra.mxu0 0.0
      %1264 = vmatpush.msra.mxu0 0.0
      %1265 = vmatpush.msra.mxu0 0.0
      %1266 = vmatpush.msra.mxu0 0.0
      %v1267 = vand.u32 %v263, 4294901760
      %v1268 = vsub.f32 %v263, %v1267
      %v1269 = vand.u32 %v1268, 4294901760
      %1270 = vmatpush.msra.mxu0 %v1269
      %v1271 = vand.u32 %v262, 4294901760
      %v1272 = vsub.f32 %v262, %v1271
      %v1273 = vand.u32 %v1272, 4294901760
      %1274 = vmatpush.msra.mxu0 %v1273
      %v1275 = vand.u32 %v261, 4294901760
      %v1276 = vsub.f32 %v261, %v1275
      %v1277 = vand.u32 %v1276, 4294901760
      %1278 = vmatpush.msra.mxu0 %v1277
      %v1279 = vand.u32 %v260, 4294901760
      %v1280 = vsub.f32 %v260, %v1279
      %v1281 = vand.u32 %v1280, 4294901760
      %1282 = vmatpush.msra.mxu0 %v1281
      %v1283 = vand.u32 %v1101, 4294901760
      %1284 = vmatmul.f32.gmra.mxu0 %v1283
      %v1285 = vpop.f32.mrf.mxu0
      %v1286 = vadd.f32 %v1247, %v1285
      %v1287 = vand.u32 %v1103, 4294901760
      %1288 = vmatmul.f32.gmra.mxu0 %v1287
      %v1289 = vpop.f32.mrf.mxu0
      %v1290 = vadd.f32 %v1253, %v1289
      %1291 = vdwg.mxu0
      %1292 = vmatpush.msra.mxu0 0.0
      %1293 = vmatpush.msra.mxu0 0.0
      %1294 = vmatpush.msra.mxu0 0.0
      %1295 = vmatpush.msra.mxu0 0.0
      %1296 = vmatpush.msra.mxu0 0.0
      %1297 = vmatpush.msra.mxu0 0.0
      %1298 = vmatpush.msra.mxu0 0.0
      %1299 = vmatpush.msra.mxu0 0.0
      %1300 = vmatpush.msra.mxu0 0.0
      %1301 = vmatpush.msra.mxu0 0.0
      %1302 = vmatpush.msra.mxu0 0.0
      %1303 = vmatpush.msra.mxu0 0.0
      %v1304 = vand.u32 %v263, 4294901760
      %1305 = vmatpush.msra.mxu0 %v1304
      %v1306 = vand.u32 %v262, 4294901760
      %1307 = vmatpush.msra.mxu0 %v1306
      %v1308 = vand.u32 %v261, 4294901760
      %1309 = vmatpush.msra.mxu0 %v1308
      %v1310 = vand.u32 %v260, 4294901760
      %1311 = vmatpush.msra.mxu0 %v1310
      %v1312 = vand.u32 %v1101, 4294901760
      %1313 = vmatmul.f32.gmra.mxu0 %v1312
      %v1314 = vpop.f32.mrf.mxu0
      %v1315 = vadd.f32 %v1286, %v1314
      %v1316 = vand.u32 %v1103, 4294901760
      %1317 = vmatmul.f32.gmra.mxu0 %v1316
      %v1318 = vpop.f32.mrf.mxu0
      %v1319 = vadd.f32 %v1290, %v1318
      %1320 = vdwg.mxu0
      %v1321 = vmax.f32 %v1315, 0.0
      %v1322 = vmax.f32 %v1319, 0.0
      %v1323 = vxor.u32 %v1315, 2147483648
      %v1324 = vxor.u32 %v1319, 2147483648
      %v1325 = vmul.f32 %v1323, 1.442695
      %v1326 = vpow.pop %v1325
      %v1327 = vmul.f32 %v1324, 1.442695
      %v1328 = vpow.pop %v1327
      %v1329 = vadd.f32 %v1326, 1.0
      %v1330 = vadd.f32 %v1328, 1.0
      %v1331 = vrcp.pop %v1329
      %v1332 = vmul.f32 %v1329, %v1331
      %v1333 = vsub.f32 1.0, %v1332
      %v1334 = vmul.f32 %v1331, %v1333
      %v1335 = vadd.f32 %v1331, %v1334
      %vm1336 = vweird.f32 %v1329
      %vm1337 = vweird.f32 %v1331
      %vm1338 = vmor %vm1336, %vm1337
      %v1339 = vsel %vm1338, %v1331, %v1335
      %v1340 = vand.u32 2147483647, %v1329
      %vm1341 = vcmp.eq.f32.partialorder %v1340, 8.507059e+37
      %v1342 = vand.u32 %v1329, 2147483648
      %v1343 = vor.u32 1.1754944e-38, %v1342
      %v1344 = vsel %vm1341, %v1343, %v1339
      %v1345 = vmul.f32 1.0, %v1344
      %v1346 = vrcp.pop %v1330
      %v1347 = vmul.f32 %v1330, %v1346
      %v1348 = vsub.f32 1.0, %v1347
      %v1349 = vmul.f32 %v1346, %v1348
      %v1350 = vadd.f32 %v1346, %v1349
      %vm1351 = vweird.f32 %v1330
      %vm1352 = vweird.f32 %v1346
      %vm1353 = vmor %vm1351, %vm1352
      %v1354 = vsel %vm1353, %v1346, %v1350
      %v1355 = vand.u32 2147483647, %v1330
      %vm1356 = vcmp.eq.f32.partialorder %v1355, 8.507059e+37
      %v1357 = vand.u32 %v1330, 2147483648
      %v1358 = vor.u32 1.1754944e-38, %v1357
      %v1359 = vsel %vm1356, %v1358, %v1354
      %v1360 = vmul.f32 1.0, %v1359
      %1363 = vrot.lane.b32.xlu0 %v1321, 64
      %v1364 = vpop.permute.xlu0 %1363
      %1365 = vrot.lane.b32.xlu0 %v1322, 64
      %v1366 = vpop.permute.xlu0 %1365
      %v1369 = vmul.f32 %v1345, %v1364
      %v1370 = vmul.f32 %v1360, %v1366
      %v1371 = vsub.f32 1.0, %v1345
      %v1372 = vsub.f32 1.0, %v1360
      %1375 = vrot.lane.b32.xlu0 %v1315, 32
      %v1376 = vpop.permute.xlu0 %1375
      %1377 = vrot.lane.b32.xlu0 %v1319, 32
      %v1378 = vpop.permute.xlu0 %1377
      %v1381 = vmul.f32 %v1371, %v1376
      %v1382 = vmul.f32 %v1372, %v1378
      %v1383 = vadd.f32 %v1369, %v1381
      %v1384 = vadd.f32 %v1370, %v1382
      %v1385 = vld [vmem:[%s4] sm:$0x1]
      %v1387 = vperm.slane %v1385, 0
      %1388 = vrot.lane.b32.xlu0 %v1387, 64
      %v1389 = vpop.permute.xlu0 %1388
      %v1391 = vmul.f32 %v1383, %v1389
      %v1392 = vmul.f32 %v1384, %v1389
      %1395 = vrot.lane.b32.xlu0 %v1391, 64
      %v1396 = vpop.permute.xlu0 %1395
      %1397 = vrot.lane.b32.xlu0 %v1392, 64
      %v1398 = vpop.permute.xlu0 %1397
      %v1401 = vsel %vm1100, %v1396, 0.0
      %1402 = vadd.xlane.f32.xlu0 %v1401
      %v1403 = vpop.xlane.xlu0 %1402
      %v1404 = vsel %vm1100, %v1398, 0.0
      %1405 = vadd.xlane.f32.xlu0 %v1404
      %v1406 = vpop.xlane.xlu0 %1405
      %v1407 = vld [vmem:[#allocation2] sm:$0x1]
      %v1409 = vperm.slane %v1407, 0
      %v1411 = vadd.f32 %v1403, %v1409
      %v1412 = vadd.f32 %v1406, %v1409
      %vm1413 = vcmask 7168
      %1414 = vst.msk [vmem:[%s258] sm:$0xff] %vm1413, %v1411
      %1415 = vst.msk [vmem:[%s258 + $0x8] sm:$0xff] %vm1413, %v1412
      %s1416 = smul.u32 2, %s19
      %p1417 = scmp.lt.s32.totalorder %s1416, 7
      %s1418 = scalar_select %p1417, %s1416, 7
      %s1419 = smul.addr %s1418, 8
      %s1420 = scalar_lea.vmem %s6, %s1419
      // Predicated region
      $region45: #{tpu_custom_call.1} parent=43 // pred_check
        %p1421 = pneg %p168
      $region46: #{tpu_custom_call.1} parent=43 // pred_check_branch
        %1423 = sbr.rel (%p1421) target = $region48
      $region47: #{tpu_custom_call.1} parent=43 // pred_region
        %s1424 = smul.u32 2, %s19
      $region48: #{tpu_custom_call.1} parent=43 // pred_fallthru
        _
    $region44: #{tpu_custom_call.1} parent=5 // pred_fallthru
      _
    %p1425 = scmp.le.s32.totalorder 2, %s14
    // Predicated region
    $region49: #{tpu_custom_call.1} parent=5 // pred_check
      %p1426 = pneg %p1425
    $region50: #{tpu_custom_call.1} parent=5 // pred_check_branch
      %1428 = sbr.rel (%p1426) target = $region52
    $region51: #{tpu_custom_call.1} parent=5 // pred_region
      %s1429 = ssub.s32 %s14, 2
      // Predicated region
      $region53: #{tpu_custom_call.1} parent=51 // pred_check
        %p1430 = pneg %p174
      $region54: #{tpu_custom_call.1} parent=51 // pred_check_branch
        %1432 = sbr.rel (%p1430) target = $region56
      $region55: #{tpu_custom_call.1} parent=51 // pred_region
        %s1433 = smul.u32 2, %s20
        %p1434 = scmp.lt.s32.totalorder %s1433, 7
        %s1435 = scalar_select %p1434, %s1433, 7
        %s1436 = smul.addr %s1435, 8
        %s1437 = scalar_lea.vmem %s6, %s1436
      $region56: #{tpu_custom_call.1} parent=51 // pred_fallthru
        _
    $region52: #{tpu_custom_call.1} parent=5 // pred_fallthru
      _
  $region6: #{tpu_custom_call.1} parent=0 // loop_footer
    %s18 = sadd.s32 1, %s14
  $region7: #{tpu_custom_call.1} parent=0 // loop_footer_branch
    %13 = sbr.rel target = $region3
  $region8: #{tpu_custom_call.1} parent=0 // loop_exit
    _

</llo_original>
